<compile_context>
chip_gen: v7x
topology: tpu7x:2x2x1
jax: 0.10.0
libtpu: 0.0.40
codegen_flags: <defaults>
</compile_context>

<pallas_src>
import functools

import jax
import jax.numpy as jnp
from jax.experimental import pallas as pl
from jax.experimental.pallas import tpu as pltpu


def _round_up(x, m):
    return ((x + m - 1) // m) * m


def _chebconv_kernel(lhat_ref, x_ref, wcat_ref, b_ref, out_ref, t_ref,
                     *, k, tm, apply_relu):
    """One ChebConv layer. Grid = (k-1 recursion sweeps, row slabs).

    Sweep j computes T_{j+1} for every row slab; the last sweep also performs
    the single wide projection matmul and writes the (lane-dense) output slab.
    """
    j = pl.program_id(0)                       # recursion sweep: computes T_{j+1}
    i = pl.program_id(1)                       # node-row slab index
    row0 = pl.multiple_of(i * tm, tm)

    lhat = lhat_ref[...]                       # (tm, n_pad) bf16 row slab of L_hat

    @pl.when(j == 0)
    def _():
        # T_0 = X ; T_1 = L_hat @ X   (bf16 operands, f32 accumulation)
        t_ref[0, pl.ds(row0, tm), :] = x_ref[pl.ds(row0, tm), :]
        t1 = jnp.dot(lhat, x_ref[...].astype(jnp.bfloat16),
                     preferred_element_type=jnp.float32)
        t_ref[1, pl.ds(row0, tm), :] = t1

    @pl.when(j > 0)
    def _():
        # T_{j+1} = 2 * L_hat @ T_j - T_{j-1}   (T_j fully written last sweep)
        prev_bf = t_ref[j].astype(jnp.bfloat16)            # full (n_pad, fin)
        prev2 = t_ref[j - 1, pl.ds(row0, tm), :]           # (tm, fin) f32
        t_next = 2.0 * jnp.dot(lhat, prev_bf,
                               preferred_element_type=jnp.float32) - prev2
        t_ref[j + 1, pl.ds(row0, tm), :] = t_next

    @pl.when(j == k - 2)
    def _():
        # One wide MXU matmul over the stacked basis (DGL Linear-over-concat).
        tcat = jnp.concatenate(
            [t_ref[s, pl.ds(row0, tm), :] for s in range(k)], axis=-1)
        z = jnp.dot(tcat, wcat_ref[...],
                    preferred_element_type=jnp.float32) + b_ref[...]
        if apply_relu:
            z = jnp.maximum(z, 0.0)
        out_ref[...] = z.astype(out_ref.dtype)


def _chebconv(lhat_bf, x, w, b, *, apply_relu, tm):
    """lhat_bf: (n_pad, n_pad) bf16; x: (n_pad, fin) f32; w: (k, fin, fout) f32."""
    n_pad = x.shape[0]
    k, fin, fout = w.shape
    wcat = w.reshape(k * fin, fout)            # Linear over concat([T_0..T_{k-1}])

    grid = (k - 1, n_pad // tm)

    # Advisory cost model for XLA scheduling around the kernel.
    flops = 2 * (k - 1) * n_pad * n_pad * fin + 2 * n_pad * (k * fin) * fout
    bytes_accessed = ((k - 1) * n_pad * n_pad * 2     # L_hat streamed per sweep (bf16)
                      + n_pad * fin * 4 + k * fin * fout * 4 + fout * 4
                      + n_pad * fout * 4)

    # Explicit VMEM budget (lane-padded widths, double-buffered blocks) + headroom.
    fin_l = _round_up(fin, 128)
    kfin_l = _round_up(k * fin, 128)
    fout_l = _round_up(fout, 128)
    vmem_bytes = (2 * tm * n_pad * 2            # L_hat row slab (bf16, double buffer)
                  + 2 * n_pad * fin_l * 4       # resident X
                  + 2 * kfin_l * fout_l * 4     # W_cat
                  + 2 * tm * fout_l * 4         # output slab
                  + k * n_pad * fin_l * 4       # T_0..T_{k-1} scratch stack
                  + (8 << 20))                  # compiler-internal headroom

    kernel = functools.partial(_chebconv_kernel, k=k, tm=tm, apply_relu=apply_relu)
    return pl.pallas_call(
        kernel,
        out_shape=jax.ShapeDtypeStruct((n_pad, fout), jnp.float32),
        grid_spec=pltpu.PrefetchScalarGridSpec(
            num_scalar_prefetch=0,
            grid=grid,
            in_specs=[
                pl.BlockSpec((tm, n_pad), lambda j, i: (i, 0)),       # L_hat row slab
                pl.BlockSpec((n_pad, fin), lambda j, i: (0, 0)),      # full X (resident)
                pl.BlockSpec((k * fin, fout), lambda j, i: (0, 0)),   # W_cat
                pl.BlockSpec((1, fout), lambda j, i: (0, 0)),         # bias
            ],
            out_specs=pl.BlockSpec((tm, fout), lambda j, i: (i, 0)),
            scratch_shapes=[pltpu.VMEM((k, n_pad, fin), jnp.float32)],
        ),
        compiler_params=pltpu.CompilerParams(
            # Row axis must stay "arbitrary": recursion reads the full T scratch
            # written by all row slabs of the previous sweep (megacore-unsafe).
            dimension_semantics=("arbitrary", "arbitrary"),
            vmem_limit_bytes=int(vmem_bytes),
        ),
        cost_estimate=pl.CostEstimate(
            flops=int(flops), transcendentals=0,
            bytes_accessed=int(bytes_accessed)),
    )(lhat_bf, x, wcat, b)


def chebnet_forward(lhat, x, w1, b1, w2, b2, *, tm=128):
    """Two stacked ChebConv layers with ReLU in between (ChebNet.forward)."""
    n, in_size = x.shape
    k = w1.shape[0]
    hid = w1.shape[-1]
    out_size = w2.shape[-1]
    assert k >= 2, "cheb_order must be >= 2 for this kernel"

    n_pad = _round_up(n, tm)
    hid_pad = _round_up(hid, 128)     # lane-dense intermediate
    out_pad = _round_up(out_size, 128)  # lane-dense output store

    # Zero-pad graph + features: padded nodes have empty L_hat rows/cols, so the
    # real rows are computed exactly and the padding is sliced off at the end.
    lhat_p = jnp.zeros((n_pad, n_pad), jnp.float32).at[:n, :n].set(lhat)
    lhat_bf = lhat_p.astype(jnp.bfloat16)      # bf16 MXU operand, f32 accumulation
    x_p = jnp.zeros((n_pad, in_size), jnp.float32).at[:n].set(x)

    w1_p = jnp.zeros((k, in_size, hid_pad), jnp.float32).at[:, :, :hid].set(w1)
    b1_p = jnp.zeros((1, hid_pad), jnp.float32).at[:, :hid].set(b1)
    w2_p = jnp.zeros((k, hid_pad, out_pad), jnp.float32).at[:, :hid, :out_size].set(w2)
    b2_p = jnp.zeros((1, out_pad), jnp.float32).at[:, :out_size].set(b2)

    h = _chebconv(lhat_bf, x_p, w1_p, b1_p, apply_relu=True, tm=tm)   # ChebConv1+ReLU
    y = _chebconv(lhat_bf, h, w2_p, b2_p, apply_relu=False, tm=tm)    # ChebConv2
    return y[:n, :out_size]


def build_scaled_laplacian(key, n):
    """Dense scaled Laplacian L_hat = L - I (lambda_max=2), L = I - D^-1/2 A D^-1/2."""
    a = jax.random.bernoulli(key, p=0.3, shape=(n, n)).astype(jnp.float32)
    a = jnp.maximum(a, a.T)                        # symmetrize
    a = a * (1.0 - jnp.eye(n, dtype=jnp.float32))  # no self loops
    deg = jnp.sum(a, axis=1)
    d_inv_sqrt = jnp.where(deg > 0, 1.0 / jnp.sqrt(jnp.maximum(deg, 1e-6)), 0.0)
    a_norm = a * d_inv_sqrt[:, None] * d_inv_sqrt[None, :]
    lap = jnp.eye(n, dtype=jnp.float32) - a_norm
    # TODO(synk): DGL computes lambda_max per-graph when not supplied; we use the default 2.0.
    return lap - jnp.eye(n, dtype=jnp.float32)


def init_cheb_params(key, in_size, out_size, k):
    """Deterministic init mimicking nn.Linear(k*in, out): U(-bound, bound)."""
    kw, kb = jax.random.split(key)
    bound = 1.0 / jnp.sqrt(jnp.float32(k * in_size))
    w = jax.random.uniform(kw, (k, in_size, out_size), jnp.float32, -bound, bound)
    b = jax.random.uniform(kb, (1, out_size), jnp.float32, -bound, bound)
    return w, b


def chebnet_reference(lhat, x, w1, b1, w2, b2):
    """Pure-JAX f32 reference of the same forward pass."""
    def layer(lh, feat, w, b):
        k = w.shape[0]
        z = feat @ w[0]
        t_prev, t = feat, None
        if k > 1:
            t = lh @ feat
            z = z + t @ w[1]
        for s in range(2, k):
            t_next = 2.0 * (lh @ t) - t_prev
            z = z + t_next @ w[s]
            t_prev, t = t, t_next
        return z + b
    h = jnp.maximum(layer(lhat, x, w1, b1), 0.0)
    return layer(lhat, h, w2, b2)


if __name__ == "__main__":
    # Small shapes: N=16 nodes, in_size=4, hidden_size=32, out_size=8, cheb_order=3.
    N, IN, HID, OUT, K = 16, 4, 32, 8, 3

    key = jax.random.PRNGKey(0)
    k_graph, k_feat, k_p1, k_p2 = jax.random.split(key, 4)

    l_hat = build_scaled_laplacian(k_graph, N)
    features = jax.random.normal(k_feat, (N, IN), jnp.float32)

    w1, b1 = init_cheb_params(k_p1, IN, HID, K)
    w2, b2 = init_cheb_params(k_p2, HID, OUT, K)

    out = jax.jit(chebnet_forward)(l_hat, features, w1, b1, w2, b2)
    out = jax.block_until_ready(out)
    assert out.shape == (N, OUT), out.shape

    # Correctness vs pure-JAX f32 reference (loose tol: bf16 L_hat@T path).
    ref = chebnet_reference(l_hat, features, w1, b1, w2, b2)
    err = float(jnp.max(jnp.abs(out - ref)))
    scale = 1.0 + float(jnp.max(jnp.abs(ref)))
    assert err <= 5e-2 * scale, (err, scale)

    print("KERNEL_OK")
</pallas_src>

<mosaic_0001>
module attributes {stable_mosaic.version = 11 : i64} {
  func.func @_chebconv_kernel(%arg0: i32, %arg1: i32, %arg2: memref<128x128xbf16, #tpu.memory_space<vmem>>, %arg3: memref<128x4xf32, #tpu.memory_space<vmem>>, %arg4: memref<12x128xf32, #tpu.memory_space<vmem>>, %arg5: memref<1x128xf32, #tpu.memory_space<vmem>>, %arg6: memref<128x128xf32, #tpu.memory_space<vmem>>, %arg7: memref<3x128x4xf32, #tpu.memory_space<vmem>>) attributes {dimension_semantics = [#tpu.dimension_semantics<arbitrary>, #tpu.dimension_semantics<arbitrary>], iteration_bounds = array<i64: 2, 1>, scalar_prefetch = 0 : i64, scratch_operands = 1 : i64, tpu.core_type = #tpu.core_type<tc>, window_params = [{transform_indices = @transform_0, window_bounds = array<i64: 128, 128>}, {pipeline_mode = #tpu.pipeline_mode<synchronous>, transform_indices = @transform_1, window_bounds = array<i64: 128, 4>}, {pipeline_mode = #tpu.pipeline_mode<synchronous>, transform_indices = @transform_2, window_bounds = array<i64: 12, 128>}, {pipeline_mode = #tpu.pipeline_mode<synchronous>, transform_indices = @transform_3, window_bounds = array<i64: 1, 128>}, {transform_indices = @transform_4, window_bounds = array<i64: 128, 128>}]} {
    %c128_i32 = arith.constant 128 : i32
    %0 = arith.muli %arg1, %c128_i32 : i32
    %1 = tpu.assume_multiple %0, 128 : i32
    %c0 = arith.constant 0 : index
    %c0_0 = arith.constant 0 : index
    %2 = vector.load %arg2[%c0, %c0_0] : memref<128x128xbf16, #tpu.memory_space<vmem>>, vector<128x128xbf16>
    %c0_i32 = arith.constant 0 : i32
    %3 = arith.cmpi eq, %arg0, %c0_i32 : i32
    %4 = arith.extui %3 : i1 to i32
    %c0_i32_1 = arith.constant 0 : i32
    %5 = arith.cmpi ne, %4, %c0_i32_1 : i32
    scf.if %5 {
      %12 = arith.index_cast %1 : i32 to index
      %c0_5 = arith.constant 0 : index
      %13 = vector.load %arg3[%12, %c0_5] : memref<128x4xf32, #tpu.memory_space<vmem>>, vector<128x4xf32>
      %c0_6 = arith.constant 0 : index
      %14 = arith.index_cast %1 : i32 to index
      %c0_7 = arith.constant 0 : index
      %15 = vector.load %arg7[%c0_6, %14, %c0_7] : memref<3x128x4xf32, #tpu.memory_space<vmem>>, vector<1x128x4xf32>
      %16 = vector.shape_cast %15 : vector<1x128x4xf32> to vector<128x4xf32>
      %17 = vector.shape_cast %13 : vector<128x4xf32> to vector<1x128x4xf32>
      tpu.vector_store %arg7[%c0_6, %14, %c0_7], %17 {strides = array<i32>} : memref<3x128x4xf32, #tpu.memory_space<vmem>>, vector<1x128x4xf32>,
      %c0_8 = arith.constant 0 : index
      %c0_9 = arith.constant 0 : index
      %18 = vector.load %arg3[%c0_8, %c0_9] : memref<128x4xf32, #tpu.memory_space<vmem>>, vector<128x4xf32>
      %19 = arith.truncf %18 : vector<128x4xf32> to vector<128x4xbf16>
      %cst = arith.constant dense<0.000000e+00> : vector<128x4xf32>
      %20 = tpu.matmul %2, %19, %cst {dimension_numbers = #tpu.dot_dimension_numbers<[1], [0], [0], [1], [0, 0, 1, 1], [], []>} : vector<128x128xbf16>, vector<128x4xbf16>, vector<128x4xf32> -> vector<128x4xf32>
      %c1 = arith.constant 1 : index
      %21 = arith.index_cast %1 : i32 to index
      %c0_10 = arith.constant 0 : index
      %22 = vector.load %arg7[%c1, %21, %c0_10] : memref<3x128x4xf32, #tpu.memory_space<vmem>>, vector<1x128x4xf32>
      %23 = vector.shape_cast %22 : vector<1x128x4xf32> to vector<128x4xf32>
      %24 = vector.shape_cast %20 : vector<128x4xf32> to vector<1x128x4xf32>
      tpu.vector_store %arg7[%c1, %21, %c0_10], %24 {strides = array<i32>} : memref<3x128x4xf32, #tpu.memory_space<vmem>>, vector<1x128x4xf32>,
    } else {
    }
    %c0_i32_2 = arith.constant 0 : i32
    %6 = arith.cmpi sgt, %arg0, %c0_i32_2 : i32
    %7 = arith.extui %6 : i1 to i32
    %c0_i32_3 = arith.constant 0 : i32
    %8 = arith.cmpi ne, %7, %c0_i32_3 : i32
    scf.if %8 {
      %12 = arith.index_cast %arg0 : i32 to index
      %c0_5 = arith.constant 0 : index
      %c0_6 = arith.constant 0 : index
      %13 = vector.load %arg7[%12, %c0_5, %c0_6] : memref<3x128x4xf32, #tpu.memory_space<vmem>>, vector<1x128x4xf32>
      %14 = vector.shape_cast %13 : vector<1x128x4xf32> to vector<128x4xf32>
      %15 = arith.truncf %14 : vector<128x4xf32> to vector<128x4xbf16>
      %c1_i32_7 = arith.constant 1 : i32
      %16 = arith.subi %arg0, %c1_i32_7 : i32
      %17 = arith.index_cast %16 : i32 to index
      %18 = arith.index_cast %1 : i32 to index
      %c0_8 = arith.constant 0 : index
      %19 = vector.load %arg7[%17, %18, %c0_8] : memref<3x128x4xf32, #tpu.memory_space<vmem>>, vector<1x128x4xf32>
      %20 = vector.shape_cast %19 : vector<1x128x4xf32> to vector<128x4xf32>
      %cst = arith.constant dense<0.000000e+00> : vector<128x4xf32>
      %21 = tpu.matmul %2, %15, %cst {dimension_numbers = #tpu.dot_dimension_numbers<[1], [0], [0], [1], [0, 0, 1, 1], [], []>} : vector<128x128xbf16>, vector<128x4xbf16>, vector<128x4xf32> -> vector<128x4xf32>
      %cst_9 = arith.constant 2.000000e+00 : f32
      %22 = vector.broadcast %cst_9 : f32 to vector<128x4xf32>
      %23 = arith.mulf %22, %21 : vector<128x4xf32>
      %24 = arith.subf %23, %20 : vector<128x4xf32>
      %c1_i32_10 = arith.constant 1 : i32
      %25 = arith.addi %arg0, %c1_i32_10 : i32
      %26 = arith.index_cast %25 : i32 to index
      %27 = arith.index_cast %1 : i32 to index
      %c0_11 = arith.constant 0 : index
      %28 = vector.load %arg7[%26, %27, %c0_11] : memref<3x128x4xf32, #tpu.memory_space<vmem>>, vector<1x128x4xf32>
      %29 = vector.shape_cast %28 : vector<1x128x4xf32> to vector<128x4xf32>
      %30 = vector.shape_cast %24 : vector<128x4xf32> to vector<1x128x4xf32>
      tpu.vector_store %arg7[%26, %27, %c0_11], %30 {strides = array<i32>} : memref<3x128x4xf32, #tpu.memory_space<vmem>>, vector<1x128x4xf32>,
    } else {
    }
    %c1_i32 = arith.constant 1 : i32
    %9 = arith.cmpi eq, %arg0, %c1_i32 : i32
    %10 = arith.extui %9 : i1 to i32
    %c0_i32_4 = arith.constant 0 : i32
    %11 = arith.cmpi ne, %10, %c0_i32_4 : i32
    scf.if %11 {
      %c0_5 = arith.constant 0 : index
      %12 = arith.index_cast %1 : i32 to index
      %c0_6 = arith.constant 0 : index
      %13 = vector.load %arg7[%c0_5, %12, %c0_6] : memref<3x128x4xf32, #tpu.memory_space<vmem>>, vector<1x128x4xf32>
      %14 = vector.shape_cast %13 : vector<1x128x4xf32> to vector<128x4xf32>
      %c1 = arith.constant 1 : index
      %15 = arith.index_cast %1 : i32 to index
      %c0_7 = arith.constant 0 : index
      %16 = vector.load %arg7[%c1, %15, %c0_7] : memref<3x128x4xf32, #tpu.memory_space<vmem>>, vector<1x128x4xf32>
      %17 = vector.shape_cast %16 : vector<1x128x4xf32> to vector<128x4xf32>
      %c2 = arith.constant 2 : index
      %18 = arith.index_cast %1 : i32 to index
      %c0_8 = arith.constant 0 : index
      %19 = vector.load %arg7[%c2, %18, %c0_8] : memref<3x128x4xf32, #tpu.memory_space<vmem>>, vector<1x128x4xf32>
      %20 = vector.shape_cast %19 : vector<1x128x4xf32> to vector<128x4xf32>
      %21 = tpu.concatenate %14, %17, %20 in 1 : vector<128x4xf32>, vector<128x4xf32>, vector<128x4xf32> -> vector<128x12xf32>
      %c0_9 = arith.constant 0 : index
      %c0_10 = arith.constant 0 : index
      %22 = vector.load %arg4[%c0_9, %c0_10] : memref<12x128xf32, #tpu.memory_space<vmem>>, vector<12x128xf32>
      %cst = arith.constant dense<0.000000e+00> : vector<128x128xf32>
      %23 = tpu.matmul %21, %22, %cst {dimension_numbers = #tpu.dot_dimension_numbers<[1], [0], [0], [1], [0, 0, 1, 1], [], []>} : vector<128x12xf32>, vector<12x128xf32>, vector<128x128xf32> -> vector<128x128xf32>
      %c0_11 = arith.constant 0 : index
      %c0_12 = arith.constant 0 : index
      %24 = vector.load %arg5[%c0_11, %c0_12] : memref<1x128xf32, #tpu.memory_space<vmem>>, vector<1x128xf32>
      %25 = vector.broadcast %24 : vector<1x128xf32> to vector<128x128xf32>
      %26 = arith.addf %23, %25 : vector<128x128xf32>
      %cst_13 = arith.constant 0.000000e+00 : f32
      %27 = vector.broadcast %cst_13 : f32 to vector<128x128xf32>
      %28 = arith.maximumf %26, %27 : vector<128x128xf32>
      %c0_14 = arith.constant 0 : index
      %c0_15 = arith.constant 0 : index
      %29 = vector.load %arg6[%c0_14, %c0_15] : memref<128x128xf32, #tpu.memory_space<vmem>>, vector<128x128xf32>
      tpu.vector_store %arg6[%c0_14, %c0_15], %28 {strides = array<i32>} : memref<128x128xf32, #tpu.memory_space<vmem>>, vector<128x128xf32>,
    } else {
    }
    return
  }
  func.func @transform_0(%arg0: i32, %arg1: i32) -> (i32, i32) {
    %c0_i32 = arith.constant 0 : i32
    %c0_i32_0 = arith.constant 0 : i32
    return %arg1, %c0_i32 : i32, i32
  }
  func.func @transform_1(%arg0: i32, %arg1: i32) -> (i32, i32) {
    %c0_i32 = arith.constant 0 : i32
    %c0_i32_0 = arith.constant 0 : i32
    %c0_i32_1 = arith.constant 0 : i32
    return %c0_i32, %c0_i32_0 : i32, i32
  }
  func.func @transform_2(%arg0: i32, %arg1: i32) -> (i32, i32) {
    %c0_i32 = arith.constant 0 : i32
    %c0_i32_0 = arith.constant 0 : i32
    %c0_i32_1 = arith.constant 0 : i32
    return %c0_i32, %c0_i32_0 : i32, i32
  }
  func.func @transform_3(%arg0: i32, %arg1: i32) -> (i32, i32) {
    %c0_i32 = arith.constant 0 : i32
    %c0_i32_0 = arith.constant 0 : i32
    %c0_i32_1 = arith.constant 0 : i32
    return %c0_i32, %c0_i32_0 : i32, i32
  }
  func.func @transform_4(%arg0: i32, %arg1: i32) -> (i32, i32) {
    %c0_i32 = arith.constant 0 : i32
    %c0_i32_0 = arith.constant 0 : i32
    return %arg1, %c0_i32 : i32, i32
  }
}

module attributes {stable_mosaic.version = 11 : i64} {
  func.func @_chebconv_kernel(%arg0: i32, %arg1: i32, %arg2: memref<128x128xbf16, #tpu.memory_space<vmem>>, %arg3: memref<128x128xf32, #tpu.memory_space<vmem>>, %arg4: memref<384x128xf32, #tpu.memory_space<vmem>>, %arg5: memref<1x128xf32, #tpu.memory_space<vmem>>, %arg6: memref<128x128xf32, #tpu.memory_space<vmem>>, %arg7: memref<3x128x128xf32, #tpu.memory_space<vmem>>) attributes {dimension_semantics = [#tpu.dimension_semantics<arbitrary>, #tpu.dimension_semantics<arbitrary>], iteration_bounds = array<i64: 2, 1>, scalar_prefetch = 0 : i64, scratch_operands = 1 : i64, tpu.core_type = #tpu.core_type<tc>, window_params = [{transform_indices = @transform_0, window_bounds = array<i64: 128, 128>}, {pipeline_mode = #tpu.pipeline_mode<synchronous>, transform_indices = @transform_1, window_bounds = array<i64: 128, 128>}, {pipeline_mode = #tpu.pipeline_mode<synchronous>, transform_indices = @transform_2, window_bounds = array<i64: 384, 128>}, {pipeline_mode = #tpu.pipeline_mode<synchronous>, transform_indices = @transform_3, window_bounds = array<i64: 1, 128>}, {transform_indices = @transform_4, window_bounds = array<i64: 128, 128>}]} {
    %c128_i32 = arith.constant 128 : i32
    %0 = arith.muli %arg1, %c128_i32 : i32
    %1 = tpu.assume_multiple %0, 128 : i32
    %c0 = arith.constant 0 : index
    %c0_0 = arith.constant 0 : index
    %2 = vector.load %arg2[%c0, %c0_0] : memref<128x128xbf16, #tpu.memory_space<vmem>>, vector<128x128xbf16>
    %c0_i32 = arith.constant 0 : i32
    %3 = arith.cmpi eq, %arg0, %c0_i32 : i32
    %4 = arith.extui %3 : i1 to i32
    %c0_i32_1 = arith.constant 0 : i32
    %5 = arith.cmpi ne, %4, %c0_i32_1 : i32
    scf.if %5 {
      %12 = arith.index_cast %1 : i32 to index
      %c0_5 = arith.constant 0 : index
      %13 = vector.load %arg3[%12, %c0_5] : memref<128x128xf32, #tpu.memory_space<vmem>>, vector<128x128xf32>
      %c0_6 = arith.constant 0 : index
      %14 = arith.index_cast %1 : i32 to index
      %c0_7 = arith.constant 0 : index
      %15 = vector.load %arg7[%c0_6, %14, %c0_7] : memref<3x128x128xf32, #tpu.memory_space<vmem>>, vector<1x128x128xf32>
      %16 = vector.shape_cast %15 : vector<1x128x128xf32> to vector<128x128xf32>
      %17 = vector.shape_cast %13 : vector<128x128xf32> to vector<1x128x128xf32>
      tpu.vector_store %arg7[%c0_6, %14, %c0_7], %17 {strides = array<i32>} : memref<3x128x128xf32, #tpu.memory_space<vmem>>, vector<1x128x128xf32>,
      %c0_8 = arith.constant 0 : index
      %c0_9 = arith.constant 0 : index
      %18 = vector.load %arg3[%c0_8, %c0_9] : memref<128x128xf32, #tpu.memory_space<vmem>>, vector<128x128xf32>
      %19 = arith.truncf %18 : vector<128x128xf32> to vector<128x128xbf16>
      %cst = arith.constant dense<0.000000e+00> : vector<128x128xf32>
      %20 = tpu.matmul %2, %19, %cst {dimension_numbers = #tpu.dot_dimension_numbers<[1], [0], [0], [1], [0, 0, 1, 1], [], []>} : vector<128x128xbf16>, vector<128x128xbf16>, vector<128x128xf32> -> vector<128x128xf32>
      %c1 = arith.constant 1 : index
      %21 = arith.index_cast %1 : i32 to index
      %c0_10 = arith.constant 0 : index
      %22 = vector.load %arg7[%c1, %21, %c0_10] : memref<3x128x128xf32, #tpu.memory_space<vmem>>, vector<1x128x128xf32>
      %23 = vector.shape_cast %22 : vector<1x128x128xf32> to vector<128x128xf32>
      %24 = vector.shape_cast %20 : vector<128x128xf32> to vector<1x128x128xf32>
      tpu.vector_store %arg7[%c1, %21, %c0_10], %24 {strides = array<i32>} : memref<3x128x128xf32, #tpu.memory_space<vmem>>, vector<1x128x128xf32>,
    } else {
    }
    %c0_i32_2 = arith.constant 0 : i32
    %6 = arith.cmpi sgt, %arg0, %c0_i32_2 : i32
    %7 = arith.extui %6 : i1 to i32
    %c0_i32_3 = arith.constant 0 : i32
    %8 = arith.cmpi ne, %7, %c0_i32_3 : i32
    scf.if %8 {
      %12 = arith.index_cast %arg0 : i32 to index
      %c0_5 = arith.constant 0 : index
      %c0_6 = arith.constant 0 : index
      %13 = vector.load %arg7[%12, %c0_5, %c0_6] : memref<3x128x128xf32, #tpu.memory_space<vmem>>, vector<1x128x128xf32>
      %14 = vector.shape_cast %13 : vector<1x128x128xf32> to vector<128x128xf32>
      %15 = arith.truncf %14 : vector<128x128xf32> to vector<128x128xbf16>
      %c1_i32_7 = arith.constant 1 : i32
      %16 = arith.subi %arg0, %c1_i32_7 : i32
      %17 = arith.index_cast %16 : i32 to index
      %18 = arith.index_cast %1 : i32 to index
      %c0_8 = arith.constant 0 : index
      %19 = vector.load %arg7[%17, %18, %c0_8] : memref<3x128x128xf32, #tpu.memory_space<vmem>>, vector<1x128x128xf32>
      %20 = vector.shape_cast %19 : vector<1x128x128xf32> to vector<128x128xf32>
      %cst = arith.constant dense<0.000000e+00> : vector<128x128xf32>
      %21 = tpu.matmul %2, %15, %cst {dimension_numbers = #tpu.dot_dimension_numbers<[1], [0], [0], [1], [0, 0, 1, 1], [], []>} : vector<128x128xbf16>, vector<128x128xbf16>, vector<128x128xf32> -> vector<128x128xf32>
      %cst_9 = arith.constant 2.000000e+00 : f32
      %22 = vector.broadcast %cst_9 : f32 to vector<128x128xf32>
      %23 = arith.mulf %22, %21 : vector<128x128xf32>
      %24 = arith.subf %23, %20 : vector<128x128xf32>
      %c1_i32_10 = arith.constant 1 : i32
      %25 = arith.addi %arg0, %c1_i32_10 : i32
      %26 = arith.index_cast %25 : i32 to index
      %27 = arith.index_cast %1 : i32 to index
      %c0_11 = arith.constant 0 : index
      %28 = vector.load %arg7[%26, %27, %c0_11] : memref<3x128x128xf32, #tpu.memory_space<vmem>>, vector<1x128x128xf32>
      %29 = vector.shape_cast %28 : vector<1x128x128xf32> to vector<128x128xf32>
      %30 = vector.shape_cast %24 : vector<128x128xf32> to vector<1x128x128xf32>
      tpu.vector_store %arg7[%26, %27, %c0_11], %30 {strides = array<i32>} : memref<3x128x128xf32, #tpu.memory_space<vmem>>, vector<1x128x128xf32>,
    } else {
    }
    %c1_i32 = arith.constant 1 : i32
    %9 = arith.cmpi eq, %arg0, %c1_i32 : i32
    %10 = arith.extui %9 : i1 to i32
    %c0_i32_4 = arith.constant 0 : i32
    %11 = arith.cmpi ne, %10, %c0_i32_4 : i32
    scf.if %11 {
      %c0_5 = arith.constant 0 : index
      %12 = arith.index_cast %1 : i32 to index
      %c0_6 = arith.constant 0 : index
      %13 = vector.load %arg7[%c0_5, %12, %c0_6] : memref<3x128x128xf32, #tpu.memory_space<vmem>>, vector<1x128x128xf32>
      %14 = vector.shape_cast %13 : vector<1x128x128xf32> to vector<128x128xf32>
      %c1 = arith.constant 1 : index
      %15 = arith.index_cast %1 : i32 to index
      %c0_7 = arith.constant 0 : index
      %16 = vector.load %arg7[%c1, %15, %c0_7] : memref<3x128x128xf32, #tpu.memory_space<vmem>>, vector<1x128x128xf32>
      %17 = vector.shape_cast %16 : vector<1x128x128xf32> to vector<128x128xf32>
      %c2 = arith.constant 2 : index
      %18 = arith.index_cast %1 : i32 to index
      %c0_8 = arith.constant 0 : index
      %19 = vector.load %arg7[%c2, %18, %c0_8] : memref<3x128x128xf32, #tpu.memory_space<vmem>>, vector<1x128x128xf32>
      %20 = vector.shape_cast %19 : vector<1x128x128xf32> to vector<128x128xf32>
      %21 = tpu.concatenate %14, %17, %20 in 1 : vector<128x128xf32>, vector<128x128xf32>, vector<128x128xf32> -> vector<128x384xf32>
      %c0_9 = arith.constant 0 : index
      %c0_10 = arith.constant 0 : index
      %22 = vector.load %arg4[%c0_9, %c0_10] : memref<384x128xf32, #tpu.memory_space<vmem>>, vector<384x128xf32>
      %cst = arith.constant dense<0.000000e+00> : vector<128x128xf32>
      %23 = tpu.matmul %21, %22, %cst {dimension_numbers = #tpu.dot_dimension_numbers<[1], [0], [0], [1], [0, 0, 1, 1], [], []>} : vector<128x384xf32>, vector<384x128xf32>, vector<128x128xf32> -> vector<128x128xf32>
      %c0_11 = arith.constant 0 : index
      %c0_12 = arith.constant 0 : index
      %24 = vector.load %arg5[%c0_11, %c0_12] : memref<1x128xf32, #tpu.memory_space<vmem>>, vector<1x128xf32>
      %25 = vector.broadcast %24 : vector<1x128xf32> to vector<128x128xf32>
      %26 = arith.addf %23, %25 : vector<128x128xf32>
      %c0_13 = arith.constant 0 : index
      %c0_14 = arith.constant 0 : index
      %27 = vector.load %arg6[%c0_13, %c0_14] : memref<128x128xf32, #tpu.memory_space<vmem>>, vector<128x128xf32>
      tpu.vector_store %arg6[%c0_13, %c0_14], %26 {strides = array<i32>} : memref<128x128xf32, #tpu.memory_space<vmem>>, vector<128x128xf32>,
    } else {
    }
    return
  }
  func.func @transform_0(%arg0: i32, %arg1: i32) -> (i32, i32) {
    %c0_i32 = arith.constant 0 : i32
    %c0_i32_0 = arith.constant 0 : i32
    return %arg1, %c0_i32 : i32, i32
  }
  func.func @transform_1(%arg0: i32, %arg1: i32) -> (i32, i32) {
    %c0_i32 = arith.constant 0 : i32
    %c0_i32_0 = arith.constant 0 : i32
    %c0_i32_1 = arith.constant 0 : i32
    return %c0_i32, %c0_i32_0 : i32, i32
  }
  func.func @transform_2(%arg0: i32, %arg1: i32) -> (i32, i32) {
    %c0_i32 = arith.constant 0 : i32
    %c0_i32_0 = arith.constant 0 : i32
    %c0_i32_1 = arith.constant 0 : i32
    return %c0_i32, %c0_i32_0 : i32, i32
  }
  func.func @transform_3(%arg0: i32, %arg1: i32) -> (i32, i32) {
    %c0_i32 = arith.constant 0 : i32
    %c0_i32_0 = arith.constant 0 : i32
    %c0_i32_1 = arith.constant 0 : i32
    return %c0_i32, %c0_i32_0 : i32, i32
  }
  func.func @transform_4(%arg0: i32, %arg1: i32) -> (i32, i32) {
    %c0_i32 = arith.constant 0 : i32
    %c0_i32_0 = arith.constant 0 : i32
    return %arg1, %c0_i32 : i32, i32
  }
}

</mosaic_0001>

<llo_original>
// kernel: chebnet_forward.2
$region0: #{chebnet_forward.2}
  #allocation0 [shape = 'u32[]', space=smem, size = 0x4, offset = 0x4, fixed_abs, tag = 'smem constant byte address 0x4 - core index']
  #allocation1 [shape = 'u32[144,128]{1,0:T(1,128)}', space=vmem, size = 0x12000, scoped, tag = 'internal scratch']
  #allocation2 [shape = 'f32[3,128,4]{2,1,0:T(8,128)}', space=vmem, size = 0x30000, scoped, tag = 'scratch operand']
  %s0 = inlined_call_operand.vmem [shape: bf16[128,128], index: 0, kind: input, shape index: {}]
  %s1 = inlined_call_operand.vmem [shape: f32[128,4], index: 1, kind: input, shape index: {}]
  %s2 = inlined_call_operand.vmem [shape: f32[12,128], index: 2, kind: input, shape index: {}]
  %s3 = inlined_call_operand.vmem [shape: f32[1,128], index: 3, kind: input, shape index: {}]
  %s4 = inlined_call_operand.vmem [shape: f32[128,128], index: 4, kind: output, shape index: {}]
  %s5 = sld [smem:[#allocation0]]
  $region61: #{chebnet_forward.2} parent=0
    _
  %s7 = ssub.s32 1, %s5
  %s8 = scalar_select 0, %s7, %s5
  loop: start=0, step=1, limit=4
  $region2: #{chebnet_forward.2} parent=0 // loop_pre_header
    _
  $region3: #{chebnet_forward.2} parent=0 // loop_header
    %s10 = sphi 0, %s14
    %p11 = scmp.ge.s32.totalorder %s10, 4
    %s17 = sphi 0, %s29
    %s18 = sphi 0, %s25
    %s19 = sphi 0, %s17
    %s20 = sphi 0, %s18
    %s21 = sphi 0, %s19
    %s22 = sphi 0, %s20
    %s32 = sphi 0, %s34
    %s35 = sphi 0, %s32
    %s36 = sphi 0, %s35
    %s52 = sphi 0, %s36
    %s56 = sphi 0, %s56
    %s58 = sphi 0, %s56
    %s59 = sphi 0, %s58
    %s73 = sphi 0, %s59
    %s77 = sphi 0, %s77
    %s79 = sphi 0, %s77
    %s80 = sphi 0, %s79
    %s94 = sphi 0, %s80
    %s98 = sphi 0, %s98
    %s100 = sphi 0, %s98
    %s101 = sphi 0, %s100
    %s115 = sphi 0, %s101
    %s121 = sphi 0, %s123
    %s124 = sphi 0, %s121
    %s125 = sphi 0, %s124
    %s141 = sphi 0, %s125
  $region4: #{chebnet_forward.2} parent=0 // loop_header_branch
    %13 = sbr.rel (%p11) target = $region8
  $region5: #{chebnet_forward.2} parent=0 // loop_body
    %s15 = ssub.s32 %s10, 1
    %s16 = ssub.s32 %s10, 2
    %s23 = sadd.s32 1, %s18
    %p24 = scmp.ge.s32.totalorder %s23, 1
    %s25 = scalar_select %p24, 0, %s23
    %s26 = sadd.s32 1, %s17
    %s27 = scalar_select %p24, %s26, %s17
    %p28 = scmp.ge.s32.totalorder %s27, 2
    %s29 = scalar_select %p28, 0, %s27
    %s30 = ssub.s32 %s18, %s25
    %p31 = scmp.eq.s32.totalorder %s30, 0
    %s33 = sadd.s32 %s32, 1
    %s34 = scalar_select %p31, %s32, %s33
    %p37 = pneg %p31
    %p38 = scmp.eq.s32.totalorder %s10, 1
    %p39 = por %p37, %p38
    %p40 = scmp.ne.s32.totalorder %s32, %s35
    %p41 = scmp.eq.s32.totalorder %s10, 0
    %p42 = por %p40, %p41
    %p43 = scmp.ne.s32.totalorder %s32, %s35
    %p44 = scmp.eq.s32.totalorder %s15, 1
    %p45 = por %p43, %p44
    %p46 = scmp.ne.s32.totalorder %s35, %s36
    %p47 = scmp.eq.s32.totalorder %s15, 0
    %p48 = por %p46, %p47
    %p49 = scmp.ne.s32.totalorder %s35, %s36
    %p50 = scmp.eq.s32.totalorder %s16, 1
    %p51 = por %p49, %p50
    %p53 = scmp.ne.s32.totalorder %s36, %s52
    %p54 = scmp.eq.s32.totalorder %s16, 0
    %p55 = por %p53, %p54
    %s57 = sadd.s32 %s56, 1
    %p60 = scmp.eq.s32.totalorder %s10, 1
    %p61 = scmp.ne.s32.totalorder %s56, %s58
    %p62 = scmp.eq.s32.totalorder %s10, 0
    %p63 = por %p61, %p62
    %p64 = scmp.ne.s32.totalorder %s56, %s58
    %p65 = scmp.eq.s32.totalorder %s15, 1
    %p66 = por %p64, %p65
    %p67 = scmp.ne.s32.totalorder %s58, %s59
    %p68 = scmp.eq.s32.totalorder %s15, 0
    %p69 = por %p67, %p68
    %p70 = scmp.ne.s32.totalorder %s58, %s59
    %p71 = scmp.eq.s32.totalorder %s16, 1
    %p72 = por %p70, %p71
    %p74 = scmp.ne.s32.totalorder %s59, %s73
    %p75 = scmp.eq.s32.totalorder %s16, 0
    %p76 = por %p74, %p75
    %s78 = sadd.s32 %s77, 1
    %p81 = scmp.eq.s32.totalorder %s10, 1
    %p82 = scmp.ne.s32.totalorder %s77, %s79
    %p83 = scmp.eq.s32.totalorder %s10, 0
    %p84 = por %p82, %p83
    %p85 = scmp.ne.s32.totalorder %s77, %s79
    %p86 = scmp.eq.s32.totalorder %s15, 1
    %p87 = por %p85, %p86
    %p88 = scmp.ne.s32.totalorder %s79, %s80
    %p89 = scmp.eq.s32.totalorder %s15, 0
    %p90 = por %p88, %p89
    %p91 = scmp.ne.s32.totalorder %s79, %s80
    %p92 = scmp.eq.s32.totalorder %s16, 1
    %p93 = por %p91, %p92
    %p95 = scmp.ne.s32.totalorder %s80, %s94
    %p96 = scmp.eq.s32.totalorder %s16, 0
    %p97 = por %p95, %p96
    %s99 = sadd.s32 %s98, 1
    %p102 = scmp.eq.s32.totalorder %s10, 1
    %p103 = scmp.ne.s32.totalorder %s98, %s100
    %p104 = scmp.eq.s32.totalorder %s10, 0
    %p105 = por %p103, %p104
    %p106 = scmp.ne.s32.totalorder %s98, %s100
    %p107 = scmp.eq.s32.totalorder %s15, 1
    %p108 = por %p106, %p107
    %p109 = scmp.ne.s32.totalorder %s100, %s101
    %p110 = scmp.eq.s32.totalorder %s15, 0
    %p111 = por %p109, %p110
    %p112 = scmp.ne.s32.totalorder %s100, %s101
    %p113 = scmp.eq.s32.totalorder %s16, 1
    %p114 = por %p112, %p113
    %p116 = scmp.ne.s32.totalorder %s101, %s115
    %p117 = scmp.eq.s32.totalorder %s16, 0
    %p118 = por %p116, %p117
    %s119 = ssub.s32 %s18, %s25
    %p120 = scmp.eq.s32.totalorder %s119, 0
    %s122 = sadd.s32 %s121, 1
    %s123 = scalar_select %p120, %s121, %s122
    %p126 = pneg %p120
    %p127 = scmp.eq.s32.totalorder %s10, 1
    %p128 = por %p126, %p127
    %p129 = scmp.ne.s32.totalorder %s121, %s124
    %p130 = scmp.eq.s32.totalorder %s10, 0
    %p131 = por %p129, %p130
    %p132 = scmp.ne.s32.totalorder %s121, %s124
    %p133 = scmp.eq.s32.totalorder %s15, 1
    %p134 = por %p132, %p133
    %p135 = scmp.ne.s32.totalorder %s124, %s125
    %p136 = scmp.eq.s32.totalorder %s15, 0
    %p137 = por %p135, %p136
    %p138 = scmp.ne.s32.totalorder %s124, %s125
    %p139 = scmp.eq.s32.totalorder %s16, 1
    %p140 = por %p138, %p139
    %p142 = scmp.ne.s32.totalorder %s125, %s141
    %p143 = scmp.eq.s32.totalorder %s16, 0
    %p144 = por %p142, %p143
    %p145 = scmp.le.s32.totalorder 1, %s10
    %p146 = scmp.lt.s32.totalorder %s10, 3
    %p147 = pnand %p145, %p146
    %p148 = pneg %p147
    // Predicated region
    $region9: #{chebnet_forward.2} parent=5 // pred_check
      _
    $region10: #{chebnet_forward.2} parent=5 // pred_check_branch
      %150 = sbr.rel (%p147) target = $region12
    $region11: #{chebnet_forward.2} parent=5 // pred_region
      %s151 = ssub.s32 %s10, 1
      // Predicated region
      $region13: #{chebnet_forward.2} parent=11 // pred_check
        %p152 = pneg %p48
      $region14: #{chebnet_forward.2} parent=11 // pred_check_branch
        %154 = sbr.rel (%p152) target = $region16
      $region15: #{chebnet_forward.2} parent=11 // pred_region
        %s155 = smul.u32 16, %s20
        %p156 = scmp.lt.s32.totalorder %s155, 15
        %s157 = scalar_select %p156, %s155, 15
        %s158 = smul.addr %s157, 4
        %s159 = scalar_lea.vmem %s0, %s158
        %s160 = smul.u32 16, %s20
      $region16: #{chebnet_forward.2} parent=11 // pred_fallthru
        _
      // Predicated region
      $region17: #{chebnet_forward.2} parent=11 // pred_check
        %p161 = pneg %p69
      $region18: #{chebnet_forward.2} parent=11 // pred_check_branch
        %163 = sbr.rel (%p161) target = $region20
      $region19: #{chebnet_forward.2} parent=11 // pred_region
        _
      $region20: #{chebnet_forward.2} parent=11 // pred_fallthru
        _
      // Predicated region
      $region21: #{chebnet_forward.2} parent=11 // pred_check
        %p164 = pneg %p90
      $region22: #{chebnet_forward.2} parent=11 // pred_check_branch
        %166 = sbr.rel (%p164) target = $region24
      $region23: #{chebnet_forward.2} parent=11 // pred_region
        _
      $region24: #{chebnet_forward.2} parent=11 // pred_fallthru
        _
      // Predicated region
      $region25: #{chebnet_forward.2} parent=11 // pred_check
        %p167 = pneg %p111
      $region26: #{chebnet_forward.2} parent=11 // pred_check_branch
        %169 = sbr.rel (%p167) target = $region28
      $region27: #{chebnet_forward.2} parent=11 // pred_region
        _
      $region28: #{chebnet_forward.2} parent=11 // pred_fallthru
        _
    $region12: #{chebnet_forward.2} parent=5 // pred_fallthru
      _
    %p170 = scmp.lt.s32.totalorder %s10, 2
    // Predicated region
    $region29: #{chebnet_forward.2} parent=5 // pred_check
      %p171 = pneg %p170
    $region30: #{chebnet_forward.2} parent=5 // pred_check_branch
      %173 = sbr.rel (%p171) target = $region32
    $region31: #{chebnet_forward.2} parent=5 // pred_region
      _
    $region32: #{chebnet_forward.2} parent=5 // pred_fallthru
      _
    %p174 = scmp.le.s32.totalorder 1, %s10
    %p175 = scmp.lt.s32.totalorder %s10, 3
    %p176 = pnand %p174, %p175
    %p177 = pneg %p176
    // Predicated region
    $region33: #{chebnet_forward.2} parent=5 // pred_check
      _
    $region34: #{chebnet_forward.2} parent=5 // pred_check_branch
      %179 = sbr.rel (%p176) target = $region36
    $region35: #{chebnet_forward.2} parent=5 // pred_region
      %s180 = ssub.s32 %s10, 1
      %s181 = smul.u32 16, %s20
      %p182 = scmp.lt.s32.totalorder %s181, 15
      %s183 = scalar_select %p182, %s181, 15
      %s184 = smul.addr %s183, 4
      %s185 = scalar_lea.vmem %s0, %s184
      %p186 = pneg %p48
      %p187 = pneg %p45
      %p188 = pneg %p69
      %p189 = pneg %p66
      %p190 = pneg %p90
      %p191 = pneg %p87
      %p192 = pneg %p111
      %p193 = pneg %p108
      %p194 = pneg %p137
      %p195 = pneg %p134
      %s196 = smul.u32 16, %s20
      %p197 = scmp.lt.s32.totalorder %s196, 15
      %s198 = scalar_select %p197, %s196, 15
      %s199 = smul.addr %s198, 8
      %s200 = scalar_lea.vmem %s4, %s199
      %s201 = smul.u32 16, %s20
      %p202 = scmp.lt.s32.totalorder %s201, 15
      %s203 = scalar_select %p202, %s201, 15
      %s204 = smul.addr %s203, 4
      %s205 = scalar_lea.vmem %s0, %s204
      %s206 = smul.u32 16, %s20
      %s207 = smul.u32 16, %s20
      %p208 = scmp.lt.s32.totalorder %s207, 15
      %s209 = scalar_select %p208, %s207, 15
      %s210 = smul.addr %s209, 8
      %s211 = scalar_lea.vmem %s4, %s210
      %s212 = smul.u32 16, %s20
      %s214 = smul.u32 %s20, 128
      %v215 = vld [vmem:[%s205] sm:$0xf]
      %v216 = vld [vmem:[%s205 + $0x4] sm:$0xf]
      %v217 = vld [vmem:[%s205 + $0x8] sm:$0xf]
      %v218 = vld [vmem:[%s205 + $0xc] sm:$0xf]
      %v219 = vld [vmem:[%s205 + $0x10] sm:$0xf]
      %v220 = vld [vmem:[%s205 + $0x14] sm:$0xf]
      %v221 = vld [vmem:[%s205 + $0x18] sm:$0xf]
      %v222 = vld [vmem:[%s205 + $0x1c] sm:$0xf]
      %v223 = vld [vmem:[%s205 + $0x20] sm:$0xf]
      %v224 = vld [vmem:[%s205 + $0x24] sm:$0xf]
      %v225 = vld [vmem:[%s205 + $0x28] sm:$0xf]
      %v226 = vld [vmem:[%s205 + $0x2c] sm:$0xf]
      %v227 = vld [vmem:[%s205 + $0x30] sm:$0xf]
      %v228 = vld [vmem:[%s205 + $0x34] sm:$0xf]
      %v229 = vld [vmem:[%s205 + $0x38] sm:$0xf]
      %v230 = vld [vmem:[%s205 + $0x3c] sm:$0xf]
      %p231 = scmp.eq.s32.totalorder %s19, 0
      // Predicated region
      $region37: #{chebnet_forward.2} parent=35 // pred_check
        %p232 = pneg %p231
      $region38: #{chebnet_forward.2} parent=35 // pred_check_branch
        %234 = sbr.rel (%p232) target = $region40
      $region39: #{chebnet_forward.2} parent=35 // pred_region
        %s235 = scalar_lea.vmem %s1, %s214
        %v236 = vld [vmem:[%s235] sm:$0xff]
        %v237 = vld [vmem:[%s235 + $0x8] sm:$0xff]
        %v238 = vld [vmem:[%s235 + $0x10] sm:$0xff]
        %v239 = vld [vmem:[%s235 + $0x18] sm:$0xff]
        %v240 = vld [vmem:[%s235 + $0x20] sm:$0xff]
        %v241 = vld [vmem:[%s235 + $0x28] sm:$0xff]
        %v242 = vld [vmem:[%s235 + $0x30] sm:$0xff]
        %v243 = vld [vmem:[%s235 + $0x38] sm:$0xff]
        %v244 = vld [vmem:[%s235 + $0x40] sm:$0xff]
        %v245 = vld [vmem:[%s235 + $0x48] sm:$0xff]
        %v246 = vld [vmem:[%s235 + $0x50] sm:$0xff]
        %v247 = vld [vmem:[%s235 + $0x58] sm:$0xff]
        %v248 = vld [vmem:[%s235 + $0x60] sm:$0xff]
        %v249 = vld [vmem:[%s235 + $0x68] sm:$0xff]
        %v250 = vld [vmem:[%s235 + $0x70] sm:$0xff]
        %v251 = vld [vmem:[%s235 + $0x78] sm:$0xff]
        %s252 = scalar_lea.vmem [#allocation2], %s214
        %vm253 = vcmask 31744
        %254 = vst.msk [vmem:[%s252] sm:$0xff] %vm253, %v236
        %255 = vst.msk [vmem:[%s252 + $0x8] sm:$0xff] %vm253, %v237
        %256 = vst.msk [vmem:[%s252 + $0x10] sm:$0xff] %vm253, %v238
        %257 = vst.msk [vmem:[%s252 + $0x18] sm:$0xff] %vm253, %v239
        %258 = vst.msk [vmem:[%s252 + $0x20] sm:$0xff] %vm253, %v240
        %259 = vst.msk [vmem:[%s252 + $0x28] sm:$0xff] %vm253, %v241
        %260 = vst.msk [vmem:[%s252 + $0x30] sm:$0xff] %vm253, %v242
        %261 = vst.msk [vmem:[%s252 + $0x38] sm:$0xff] %vm253, %v243
        %262 = vst.msk [vmem:[%s252 + $0x40] sm:$0xff] %vm253, %v244
        %263 = vst.msk [vmem:[%s252 + $0x48] sm:$0xff] %vm253, %v245
        %264 = vst.msk [vmem:[%s252 + $0x50] sm:$0xff] %vm253, %v246
        %265 = vst.msk [vmem:[%s252 + $0x58] sm:$0xff] %vm253, %v247
        %266 = vst.msk [vmem:[%s252 + $0x60] sm:$0xff] %vm253, %v248
        %267 = vst.msk [vmem:[%s252 + $0x68] sm:$0xff] %vm253, %v249
        %268 = vst.msk [vmem:[%s252 + $0x70] sm:$0xff] %vm253, %v250
        %269 = vst.msk [vmem:[%s252 + $0x78] sm:$0xff] %vm253, %v251
        %v270 = vld [vmem:[%s1] sm:$0xff]
        %v271 = vld [vmem:[%s1 + $0x8] sm:$0xff]
        %v272 = vld [vmem:[%s1 + $0x10] sm:$0xff]
        %v273 = vld [vmem:[%s1 + $0x18] sm:$0xff]
        %v274 = vld [vmem:[%s1 + $0x20] sm:$0xff]
        %v275 = vld [vmem:[%s1 + $0x28] sm:$0xff]
        %v276 = vld [vmem:[%s1 + $0x30] sm:$0xff]
        %v277 = vld [vmem:[%s1 + $0x38] sm:$0xff]
        %v278 = vld [vmem:[%s1 + $0x40] sm:$0xff]
        %v279 = vld [vmem:[%s1 + $0x48] sm:$0xff]
        %v280 = vld [vmem:[%s1 + $0x50] sm:$0xff]
        %v281 = vld [vmem:[%s1 + $0x58] sm:$0xff]
        %v282 = vld [vmem:[%s1 + $0x60] sm:$0xff]
        %v283 = vld [vmem:[%s1 + $0x68] sm:$0xff]
        %v284 = vld [vmem:[%s1 + $0x70] sm:$0xff]
        %v285 = vld [vmem:[%s1 + $0x78] sm:$0xff]
        %v286 = vpack.c.bf16 %v271, %v270
        %v287 = vpack.c.bf16 %v273, %v272
        %v288 = vpack.c.bf16 %v275, %v274
        %v289 = vpack.c.bf16 %v277, %v276
        %v290 = vpack.c.bf16 %v279, %v278
        %v291 = vpack.c.bf16 %v281, %v280
        %v292 = vpack.c.bf16 %v283, %v282
        %v293 = vpack.c.bf16 %v285, %v284
        %v310 = vunpack.c.l.b16 %v215
        %v311 = vunpack.c.l.b16 %v216
        %v312 = vunpack.c.l.b16 %v217
        %v313 = vunpack.c.l.b16 %v218
        %v314 = vunpack.c.l.b16 %v219
        %v315 = vunpack.c.l.b16 %v220
        %v316 = vunpack.c.l.b16 %v221
        %v317 = vunpack.c.l.b16 %v222
        %v318 = vunpack.c.l.b16 %v223
        %v319 = vunpack.c.l.b16 %v224
        %v320 = vunpack.c.l.b16 %v225
        %v321 = vunpack.c.l.b16 %v226
        %v322 = vunpack.c.l.b16 %v227
        %v323 = vunpack.c.l.b16 %v228
        %v324 = vunpack.c.l.b16 %v229
        %v325 = vunpack.c.l.b16 %v230
        %v326 = vpack.c.b16 %v311, %v310
        %v327 = vpack.c.b16 %v313, %v312
        %v328 = vpack.c.b16 %v315, %v314
        %v329 = vpack.c.b16 %v317, %v316
        %v330 = vpack.c.b16 %v319, %v318
        %v331 = vpack.c.b16 %v321, %v320
        %v332 = vpack.c.b16 %v323, %v322
        %v333 = vpack.c.b16 %v325, %v324
        %342 = vmatprep.subr.bf16.mxu0 0
        %343 = vmatpush1.bf16.msra.mxu0 %v286
        %344 = vmatprep.subr.bf16.mxu0 0
        %345 = vmatpush1.bf16.msra.mxu0 %v287
        %346 = vmatprep.subr.bf16.mxu0 0
        %347 = vmatpush1.bf16.msra.mxu0 %v288
        %348 = vmatprep.subr.bf16.mxu0 0
        %349 = vmatpush1.bf16.msra.mxu0 %v289
        %350 = vmatprep.subr.bf16.mxu0 0
        %351 = vmatpush1.bf16.msra.mxu0 %v290
        %352 = vmatprep.subr.bf16.mxu0 0
        %353 = vmatpush1.bf16.msra.mxu0 %v291
        %354 = vmatprep.subr.bf16.mxu0 0
        %355 = vmatpush1.bf16.msra.mxu0 %v292
        %356 = vmatprep.subr.bf16.mxu0 0
        %357 = vmatpush1.bf16.msra.mxu0 %v293
        %358 = vmatprep.subr.bf16.mxu0 0
        %359 = vmatpush1.bf16.msra.mxu0 0
        %360 = vmatprep.subr.bf16.mxu0 0
        %361 = vmatpush1.bf16.msra.mxu0 0
        %362 = vmatprep.subr.bf16.mxu0 0
        %363 = vmatpush1.bf16.msra.mxu0 0
        %364 = vmatprep.subr.bf16.mxu0 0
        %365 = vmatpush1.bf16.msra.mxu0 0
        %366 = vmatprep.subr.bf16.mxu0 0
        %367 = vmatpush1.bf16.msra.mxu0 0
        %368 = vmatprep.subr.bf16.mxu0 0
        %369 = vmatpush1.bf16.msra.mxu0 0
        %370 = vmatprep.subr.bf16.mxu0 0
        %371 = vmatpush1.bf16.msra.mxu0 0
        %372 = vmatprep.subr.bf16.mxu0 0
        %373 = vmatpush1.bf16.msra.mxu0 0
        %374 = vmatprep.mubr.bf16.mxu0 0
        %375 = vmatmul.mubr.bf16.gmra.mrb[0].mxu0 %v326
        %v376 = vpop.f32.mrb[0].mxu0
        %v377 = vadd.f32 0.0, %v376
        %v378 = vpop.f32.mrb[0].mxu0
        %v379 = vpop.f32.mrb[0].mxu0
        %v380 = vadd.f32 0.0, %v379
        %v381 = vpop.f32.mrb[0].mxu0
        %382 = vmatprep.mubr.bf16.mxu0 0
        %383 = vmatmul.mubr.bf16.gmra.mrb[0].mxu0 %v327
        %v384 = vpop.f32.mrb[0].mxu0
        %v385 = vadd.f32 0.0, %v384
        %v386 = vpop.f32.mrb[0].mxu0
        %v387 = vpop.f32.mrb[0].mxu0
        %v388 = vadd.f32 0.0, %v387
        %v389 = vpop.f32.mrb[0].mxu0
        %390 = vmatprep.mubr.bf16.mxu0 0
        %391 = vmatmul.mubr.bf16.gmra.mrb[0].mxu0 %v328
        %v392 = vpop.f32.mrb[0].mxu0
        %v393 = vadd.f32 0.0, %v392
        %v394 = vpop.f32.mrb[0].mxu0
        %v395 = vpop.f32.mrb[0].mxu0
        %v396 = vadd.f32 0.0, %v395
        %v397 = vpop.f32.mrb[0].mxu0
        %398 = vmatprep.mubr.bf16.mxu0 0
        %399 = vmatmul.mubr.bf16.gmra.mrb[0].mxu0 %v329
        %v400 = vpop.f32.mrb[0].mxu0
        %v401 = vadd.f32 0.0, %v400
        %v402 = vpop.f32.mrb[0].mxu0
        %v403 = vpop.f32.mrb[0].mxu0
        %v404 = vadd.f32 0.0, %v403
        %v405 = vpop.f32.mrb[0].mxu0
        %406 = vmatprep.mubr.bf16.mxu0 0
        %407 = vmatmul.mubr.bf16.gmra.mrb[0].mxu0 %v330
        %v408 = vpop.f32.mrb[0].mxu0
        %v409 = vadd.f32 0.0, %v408
        %v410 = vpop.f32.mrb[0].mxu0
        %v411 = vpop.f32.mrb[0].mxu0
        %v412 = vadd.f32 0.0, %v411
        %v413 = vpop.f32.mrb[0].mxu0
        %414 = vmatprep.mubr.bf16.mxu0 0
        %415 = vmatmul.mubr.bf16.gmra.mrb[0].mxu0 %v331
        %v416 = vpop.f32.mrb[0].mxu0
        %v417 = vadd.f32 0.0, %v416
        %v418 = vpop.f32.mrb[0].mxu0
        %v419 = vpop.f32.mrb[0].mxu0
        %v420 = vadd.f32 0.0, %v419
        %v421 = vpop.f32.mrb[0].mxu0
        %422 = vmatprep.mubr.bf16.mxu0 0
        %423 = vmatmul.mubr.bf16.gmra.mrb[0].mxu0 %v332
        %v424 = vpop.f32.mrb[0].mxu0
        %v425 = vadd.f32 0.0, %v424
        %v426 = vpop.f32.mrb[0].mxu0
        %v427 = vpop.f32.mrb[0].mxu0
        %v428 = vadd.f32 0.0, %v427
        %v429 = vpop.f32.mrb[0].mxu0
        %430 = vmatprep.mubr.bf16.mxu0 0
        %431 = vmatmul.mubr.bf16.gmra.mrb[0].mxu0 %v333
        %v432 = vpop.f32.mrb[0].mxu0
        %v433 = vadd.f32 0.0, %v432
        %v434 = vpop.f32.mrb[0].mxu0
        %v435 = vpop.f32.mrb[0].mxu0
        %v436 = vadd.f32 0.0, %v435
        %v437 = vpop.f32.mrb[0].mxu0
        %438 = vdwg.mxu0
        %s439 = sadd.s32 %s214, 128
        %s440 = scalar_lea.vmem [#allocation2], %s439
        %441 = vst.msk [vmem:[%s440] sm:$0xff] %vm253, %v377
        %442 = vst.msk [vmem:[%s440 + $0x8] sm:$0xff] %vm253, %v380
        %443 = vst.msk [vmem:[%s440 + $0x10] sm:$0xff] %vm253, %v385
        %444 = vst.msk [vmem:[%s440 + $0x18] sm:$0xff] %vm253, %v388
        %445 = vst.msk [vmem:[%s440 + $0x20] sm:$0xff] %vm253, %v393
        %446 = vst.msk [vmem:[%s440 + $0x28] sm:$0xff] %vm253, %v396
        %447 = vst.msk [vmem:[%s440 + $0x30] sm:$0xff] %vm253, %v401
        %448 = vst.msk [vmem:[%s440 + $0x38] sm:$0xff] %vm253, %v404
        %449 = vst.msk [vmem:[%s440 + $0x40] sm:$0xff] %vm253, %v409
        %450 = vst.msk [vmem:[%s440 + $0x48] sm:$0xff] %vm253, %v412
        %451 = vst.msk [vmem:[%s440 + $0x50] sm:$0xff] %vm253, %v417
        %452 = vst.msk [vmem:[%s440 + $0x58] sm:$0xff] %vm253, %v420
        %453 = vst.msk [vmem:[%s440 + $0x60] sm:$0xff] %vm253, %v425
        %454 = vst.msk [vmem:[%s440 + $0x68] sm:$0xff] %vm253, %v428
        %455 = vst.msk [vmem:[%s440 + $0x70] sm:$0xff] %vm253, %v433
        %456 = vst.msk [vmem:[%s440 + $0x78] sm:$0xff] %vm253, %v436
      $region40: #{chebnet_forward.2} parent=35 // pred_fallthru
        _
      %p457 = scmp.gt.s32.totalorder %s19, 0
      // Predicated region
      $region41: #{chebnet_forward.2} parent=35 // pred_check
        %p458 = pneg %p457
      $region42: #{chebnet_forward.2} parent=35 // pred_check_branch
        %460 = sbr.rel (%p458) target = $region44
      $region43: #{chebnet_forward.2} parent=35 // pred_region
        %s461 = smul.u32 %s19, 128
        %s462 = scalar_lea.vmem [#allocation2], %s461
        %v463 = vld [vmem:[%s462] sm:$0xff]
        %v464 = vld [vmem:[%s462 + $0x8] sm:$0xff]
        %v465 = vld [vmem:[%s462 + $0x10] sm:$0xff]
        %v466 = vld [vmem:[%s462 + $0x18] sm:$0xff]
        %v467 = vld [vmem:[%s462 + $0x20] sm:$0xff]
        %v468 = vld [vmem:[%s462 + $0x28] sm:$0xff]
        %v469 = vld [vmem:[%s462 + $0x30] sm:$0xff]
        %v470 = vld [vmem:[%s462 + $0x38] sm:$0xff]
        %v471 = vld [vmem:[%s462 + $0x40] sm:$0xff]
        %v472 = vld [vmem:[%s462 + $0x48] sm:$0xff]
        %v473 = vld [vmem:[%s462 + $0x50] sm:$0xff]
        %v474 = vld [vmem:[%s462 + $0x58] sm:$0xff]
        %v475 = vld [vmem:[%s462 + $0x60] sm:$0xff]
        %v476 = vld [vmem:[%s462 + $0x68] sm:$0xff]
        %v477 = vld [vmem:[%s462 + $0x70] sm:$0xff]
        %v478 = vld [vmem:[%s462 + $0x78] sm:$0xff]
        %v479 = vpack.c.bf16 %v464, %v463
        %v480 = vpack.c.bf16 %v466, %v465
        %v481 = vpack.c.bf16 %v468, %v467
        %v482 = vpack.c.bf16 %v470, %v469
        %v483 = vpack.c.bf16 %v472, %v471
        %v484 = vpack.c.bf16 %v474, %v473
        %v485 = vpack.c.bf16 %v476, %v475
        %v486 = vpack.c.bf16 %v478, %v477
        %s487 = ssub.s32 %s19, 1
        %s488 = smul.u32 %s487, 128
        %s489 = sadd.s32 %s214, %s488
        %s490 = scalar_lea.vmem [#allocation2], %s489
        %v491 = vld [vmem:[%s490] sm:$0xff]
        %v492 = vld [vmem:[%s490 + $0x8] sm:$0xff]
        %v493 = vld [vmem:[%s490 + $0x10] sm:$0xff]
        %v494 = vld [vmem:[%s490 + $0x18] sm:$0xff]
        %v495 = vld [vmem:[%s490 + $0x20] sm:$0xff]
        %v496 = vld [vmem:[%s490 + $0x28] sm:$0xff]
        %v497 = vld [vmem:[%s490 + $0x30] sm:$0xff]
        %v498 = vld [vmem:[%s490 + $0x38] sm:$0xff]
        %v499 = vld [vmem:[%s490 + $0x40] sm:$0xff]
        %v500 = vld [vmem:[%s490 + $0x48] sm:$0xff]
        %v501 = vld [vmem:[%s490 + $0x50] sm:$0xff]
        %v502 = vld [vmem:[%s490 + $0x58] sm:$0xff]
        %v503 = vld [vmem:[%s490 + $0x60] sm:$0xff]
        %v504 = vld [vmem:[%s490 + $0x68] sm:$0xff]
        %v505 = vld [vmem:[%s490 + $0x70] sm:$0xff]
        %v506 = vld [vmem:[%s490 + $0x78] sm:$0xff]
        %v523 = vunpack.c.l.b16 %v215
        %v524 = vunpack.c.l.b16 %v216
        %v525 = vunpack.c.l.b16 %v217
        %v526 = vunpack.c.l.b16 %v218
        %v527 = vunpack.c.l.b16 %v219
        %v528 = vunpack.c.l.b16 %v220
        %v529 = vunpack.c.l.b16 %v221
        %v530 = vunpack.c.l.b16 %v222
        %v531 = vunpack.c.l.b16 %v223
        %v532 = vunpack.c.l.b16 %v224
        %v533 = vunpack.c.l.b16 %v225
        %v534 = vunpack.c.l.b16 %v226
        %v535 = vunpack.c.l.b16 %v227
        %v536 = vunpack.c.l.b16 %v228
        %v537 = vunpack.c.l.b16 %v229
        %v538 = vunpack.c.l.b16 %v230
        %v539 = vpack.c.b16 %v524, %v523
        %v540 = vpack.c.b16 %v526, %v525
        %v541 = vpack.c.b16 %v528, %v527
        %v542 = vpack.c.b16 %v530, %v529
        %v543 = vpack.c.b16 %v532, %v531
        %v544 = vpack.c.b16 %v534, %v533
        %v545 = vpack.c.b16 %v536, %v535
        %v546 = vpack.c.b16 %v538, %v537
        %555 = vmatprep.subr.bf16.mxu0 0
        %556 = vmatpush1.bf16.msra.mxu0 %v479
        %557 = vmatprep.subr.bf16.mxu0 0
        %558 = vmatpush1.bf16.msra.mxu0 %v480
        %559 = vmatprep.subr.bf16.mxu0 0
        %560 = vmatpush1.bf16.msra.mxu0 %v481
        %561 = vmatprep.subr.bf16.mxu0 0
        %562 = vmatpush1.bf16.msra.mxu0 %v482
        %563 = vmatprep.subr.bf16.mxu0 0
        %564 = vmatpush1.bf16.msra.mxu0 %v483
        %565 = vmatprep.subr.bf16.mxu0 0
        %566 = vmatpush1.bf16.msra.mxu0 %v484
        %567 = vmatprep.subr.bf16.mxu0 0
        %568 = vmatpush1.bf16.msra.mxu0 %v485
        %569 = vmatprep.subr.bf16.mxu0 0
        %570 = vmatpush1.bf16.msra.mxu0 %v486
        %571 = vmatprep.subr.bf16.mxu0 0
        %572 = vmatpush1.bf16.msra.mxu0 0
        %573 = vmatprep.subr.bf16.mxu0 0
        %574 = vmatpush1.bf16.msra.mxu0 0
        %575 = vmatprep.subr.bf16.mxu0 0
        %576 = vmatpush1.bf16.msra.mxu0 0
        %577 = vmatprep.subr.bf16.mxu0 0
        %578 = vmatpush1.bf16.msra.mxu0 0
        %579 = vmatprep.subr.bf16.mxu0 0
        %580 = vmatpush1.bf16.msra.mxu0 0
        %581 = vmatprep.subr.bf16.mxu0 0
        %582 = vmatpush1.bf16.msra.mxu0 0
        %583 = vmatprep.subr.bf16.mxu0 0
        %584 = vmatpush1.bf16.msra.mxu0 0
        %585 = vmatprep.subr.bf16.mxu0 0
        %586 = vmatpush1.bf16.msra.mxu0 0
        %587 = vmatprep.mubr.bf16.mxu0 0
        %588 = vmatmul.mubr.bf16.gmra.mrb[0].mxu0 %v539
        %v589 = vpop.f32.mrb[0].mxu0
        %v590 = vadd.f32 0.0, %v589
        %v591 = vpop.f32.mrb[0].mxu0
        %v592 = vpop.f32.mrb[0].mxu0
        %v593 = vadd.f32 0.0, %v592
        %v594 = vpop.f32.mrb[0].mxu0
        %595 = vmatprep.mubr.bf16.mxu0 0
        %596 = vmatmul.mubr.bf16.gmra.mrb[0].mxu0 %v540
        %v597 = vpop.f32.mrb[0].mxu0
        %v598 = vadd.f32 0.0, %v597
        %v599 = vpop.f32.mrb[0].mxu0
        %v600 = vpop.f32.mrb[0].mxu0
        %v601 = vadd.f32 0.0, %v600
        %v602 = vpop.f32.mrb[0].mxu0
        %603 = vmatprep.mubr.bf16.mxu0 0
        %604 = vmatmul.mubr.bf16.gmra.mrb[0].mxu0 %v541
        %v605 = vpop.f32.mrb[0].mxu0
        %v606 = vadd.f32 0.0, %v605
        %v607 = vpop.f32.mrb[0].mxu0
        %v608 = vpop.f32.mrb[0].mxu0
        %v609 = vadd.f32 0.0, %v608
        %v610 = vpop.f32.mrb[0].mxu0
        %611 = vmatprep.mubr.bf16.mxu0 0
        %612 = vmatmul.mubr.bf16.gmra.mrb[0].mxu0 %v542
        %v613 = vpop.f32.mrb[0].mxu0
        %v614 = vadd.f32 0.0, %v613
        %v615 = vpop.f32.mrb[0].mxu0
        %v616 = vpop.f32.mrb[0].mxu0
        %v617 = vadd.f32 0.0, %v616
        %v618 = vpop.f32.mrb[0].mxu0
        %619 = vmatprep.mubr.bf16.mxu0 0
        %620 = vmatmul.mubr.bf16.gmra.mrb[0].mxu0 %v543
        %v621 = vpop.f32.mrb[0].mxu0
        %v622 = vadd.f32 0.0, %v621
        %v623 = vpop.f32.mrb[0].mxu0
        %v624 = vpop.f32.mrb[0].mxu0
        %v625 = vadd.f32 0.0, %v624
        %v626 = vpop.f32.mrb[0].mxu0
        %627 = vmatprep.mubr.bf16.mxu0 0
        %628 = vmatmul.mubr.bf16.gmra.mrb[0].mxu0 %v544
        %v629 = vpop.f32.mrb[0].mxu0
        %v630 = vadd.f32 0.0, %v629
        %v631 = vpop.f32.mrb[0].mxu0
        %v632 = vpop.f32.mrb[0].mxu0
        %v633 = vadd.f32 0.0, %v632
        %v634 = vpop.f32.mrb[0].mxu0
        %635 = vmatprep.mubr.bf16.mxu0 0
        %636 = vmatmul.mubr.bf16.gmra.mrb[0].mxu0 %v545
        %v637 = vpop.f32.mrb[0].mxu0
        %v638 = vadd.f32 0.0, %v637
        %v639 = vpop.f32.mrb[0].mxu0
        %v640 = vpop.f32.mrb[0].mxu0
        %v641 = vadd.f32 0.0, %v640
        %v642 = vpop.f32.mrb[0].mxu0
        %643 = vmatprep.mubr.bf16.mxu0 0
        %644 = vmatmul.mubr.bf16.gmra.mrb[0].mxu0 %v546
        %v645 = vpop.f32.mrb[0].mxu0
        %v646 = vadd.f32 0.0, %v645
        %v647 = vpop.f32.mrb[0].mxu0
        %v648 = vpop.f32.mrb[0].mxu0
        %v649 = vadd.f32 0.0, %v648
        %v650 = vpop.f32.mrb[0].mxu0
        %651 = vdwg.mxu0
        %v652 = vmul.f32 %v590, 2.0
        %v653 = vmul.f32 %v593, 2.0
        %v654 = vmul.f32 %v598, 2.0
        %v655 = vmul.f32 %v601, 2.0
        %v656 = vmul.f32 %v606, 2.0
        %v657 = vmul.f32 %v609, 2.0
        %v658 = vmul.f32 %v614, 2.0
        %v659 = vmul.f32 %v617, 2.0
        %v660 = vmul.f32 %v622, 2.0
        %v661 = vmul.f32 %v625, 2.0
        %v662 = vmul.f32 %v630, 2.0
        %v663 = vmul.f32 %v633, 2.0
        %v664 = vmul.f32 %v638, 2.0
        %v665 = vmul.f32 %v641, 2.0
        %v666 = vmul.f32 %v646, 2.0
        %v667 = vmul.f32 %v649, 2.0
        %v668 = vsub.f32 %v652, %v491
        %v669 = vsub.f32 %v653, %v492
        %v670 = vsub.f32 %v654, %v493
        %v671 = vsub.f32 %v655, %v494
        %v672 = vsub.f32 %v656, %v495
        %v673 = vsub.f32 %v657, %v496
        %v674 = vsub.f32 %v658, %v497
        %v675 = vsub.f32 %v659, %v498
        %v676 = vsub.f32 %v660, %v499
        %v677 = vsub.f32 %v661, %v500
        %v678 = vsub.f32 %v662, %v501
        %v679 = vsub.f32 %v663, %v502
        %v680 = vsub.f32 %v664, %v503
        %v681 = vsub.f32 %v665, %v504
        %v682 = vsub.f32 %v666, %v505
        %v683 = vsub.f32 %v667, %v506
        %s684 = sadd.s32 %s19, 1
        %s685 = smul.u32 %s684, 128
        %s686 = sadd.s32 %s214, %s685
        %s687 = scalar_lea.vmem [#allocation2], %s686
        %vm688 = vcmask 31744
        %689 = vst.msk [vmem:[%s687] sm:$0xff] %vm688, %v668
        %690 = vst.msk [vmem:[%s687 + $0x8] sm:$0xff] %vm688, %v669
        %691 = vst.msk [vmem:[%s687 + $0x10] sm:$0xff] %vm688, %v670
        %692 = vst.msk [vmem:[%s687 + $0x18] sm:$0xff] %vm688, %v671
        %693 = vst.msk [vmem:[%s687 + $0x20] sm:$0xff] %vm688, %v672
        %694 = vst.msk [vmem:[%s687 + $0x28] sm:$0xff] %vm688, %v673
        %695 = vst.msk [vmem:[%s687 + $0x30] sm:$0xff] %vm688, %v674
        %696 = vst.msk [vmem:[%s687 + $0x38] sm:$0xff] %vm688, %v675
        %697 = vst.msk [vmem:[%s687 + $0x40] sm:$0xff] %vm688, %v676
        %698 = vst.msk [vmem:[%s687 + $0x48] sm:$0xff] %vm688, %v677
        %699 = vst.msk [vmem:[%s687 + $0x50] sm:$0xff] %vm688, %v678
        %700 = vst.msk [vmem:[%s687 + $0x58] sm:$0xff] %vm688, %v679
        %701 = vst.msk [vmem:[%s687 + $0x60] sm:$0xff] %vm688, %v680
        %702 = vst.msk [vmem:[%s687 + $0x68] sm:$0xff] %vm688, %v681
        %703 = vst.msk [vmem:[%s687 + $0x70] sm:$0xff] %vm688, %v682
        %704 = vst.msk [vmem:[%s687 + $0x78] sm:$0xff] %vm688, %v683
      $region44: #{chebnet_forward.2} parent=35 // pred_fallthru
        _
      %p705 = scmp.eq.s32.totalorder %s19, 1
      // Predicated region
      $region45: #{chebnet_forward.2} parent=35 // pred_check
        %p706 = pneg %p705
      $region46: #{chebnet_forward.2} parent=35 // pred_check_branch
        %708 = sbr.rel (%p706) target = $region48
      $region47: #{chebnet_forward.2} parent=35 // pred_region
        %s709 = scalar_lea.vmem [#allocation2], %s214
        %v710 = vld [vmem:[%s709] sm:$0xff]
        %v711 = vld [vmem:[%s709 + $0x8] sm:$0xff]
        %v712 = vld [vmem:[%s709 + $0x10] sm:$0xff]
        %v713 = vld [vmem:[%s709 + $0x18] sm:$0xff]
        %v714 = vld [vmem:[%s709 + $0x20] sm:$0xff]
        %v715 = vld [vmem:[%s709 + $0x28] sm:$0xff]
        %v716 = vld [vmem:[%s709 + $0x30] sm:$0xff]
        %v717 = vld [vmem:[%s709 + $0x38] sm:$0xff]
        %v718 = vld [vmem:[%s709 + $0x40] sm:$0xff]
        %v719 = vld [vmem:[%s709 + $0x48] sm:$0xff]
        %v720 = vld [vmem:[%s709 + $0x50] sm:$0xff]
        %v721 = vld [vmem:[%s709 + $0x58] sm:$0xff]
        %v722 = vld [vmem:[%s709 + $0x60] sm:$0xff]
        %v723 = vld [vmem:[%s709 + $0x68] sm:$0xff]
        %v724 = vld [vmem:[%s709 + $0x70] sm:$0xff]
        %v725 = vld [vmem:[%s709 + $0x78] sm:$0xff]
        %s726 = sadd.s32 %s214, 128
        %s727 = scalar_lea.vmem [#allocation2], %s726
        %v728 = vld [vmem:[%s727] sm:$0xff]
        %v729 = vld [vmem:[%s727 + $0x8] sm:$0xff]
        %v730 = vld [vmem:[%s727 + $0x10] sm:$0xff]
        %v731 = vld [vmem:[%s727 + $0x18] sm:$0xff]
        %v732 = vld [vmem:[%s727 + $0x20] sm:$0xff]
        %v733 = vld [vmem:[%s727 + $0x28] sm:$0xff]
        %v734 = vld [vmem:[%s727 + $0x30] sm:$0xff]
        %v735 = vld [vmem:[%s727 + $0x38] sm:$0xff]
        %v736 = vld [vmem:[%s727 + $0x40] sm:$0xff]
        %v737 = vld [vmem:[%s727 + $0x48] sm:$0xff]
        %v738 = vld [vmem:[%s727 + $0x50] sm:$0xff]
        %v739 = vld [vmem:[%s727 + $0x58] sm:$0xff]
        %v740 = vld [vmem:[%s727 + $0x60] sm:$0xff]
        %v741 = vld [vmem:[%s727 + $0x68] sm:$0xff]
        %v742 = vld [vmem:[%s727 + $0x70] sm:$0xff]
        %v743 = vld [vmem:[%s727 + $0x78] sm:$0xff]
        %s744 = sadd.s32 %s214, 256
        %s745 = scalar_lea.vmem [#allocation2], %s744
        %v746 = vld [vmem:[%s745] sm:$0xff]
        %v747 = vld [vmem:[%s745 + $0x8] sm:$0xff]
        %v748 = vld [vmem:[%s745 + $0x10] sm:$0xff]
        %v749 = vld [vmem:[%s745 + $0x18] sm:$0xff]
        %v750 = vld [vmem:[%s745 + $0x20] sm:$0xff]
        %v751 = vld [vmem:[%s745 + $0x28] sm:$0xff]
        %v752 = vld [vmem:[%s745 + $0x30] sm:$0xff]
        %v753 = vld [vmem:[%s745 + $0x38] sm:$0xff]
        %v754 = vld [vmem:[%s745 + $0x40] sm:$0xff]
        %v755 = vld [vmem:[%s745 + $0x48] sm:$0xff]
        %v756 = vld [vmem:[%s745 + $0x50] sm:$0xff]
        %v757 = vld [vmem:[%s745 + $0x58] sm:$0xff]
        %v758 = vld [vmem:[%s745 + $0x60] sm:$0xff]
        %v759 = vld [vmem:[%s745 + $0x68] sm:$0xff]
        %v760 = vld [vmem:[%s745 + $0x70] sm:$0xff]
        %v761 = vld [vmem:[%s745 + $0x78] sm:$0xff]
        %778 = vrot.lane.b32.xlu0 %v728, 4
        %v779 = vpop.permute.xlu0 %778
        %780 = vrot.lane.b32.xlu0 %v729, 4
        %v781 = vpop.permute.xlu0 %780
        %782 = vrot.lane.b32.xlu0 %v730, 4
        %v783 = vpop.permute.xlu0 %782
        %784 = vrot.lane.b32.xlu0 %v731, 4
        %v785 = vpop.permute.xlu0 %784
        %786 = vrot.lane.b32.xlu0 %v732, 4
        %v787 = vpop.permute.xlu0 %786
        %788 = vrot.lane.b32.xlu0 %v733, 4
        %v789 = vpop.permute.xlu0 %788
        %790 = vrot.lane.b32.xlu0 %v734, 4
        %v791 = vpop.permute.xlu0 %790
        %792 = vrot.lane.b32.xlu0 %v735, 4
        %v793 = vpop.permute.xlu0 %792
        %794 = vrot.lane.b32.xlu0 %v736, 4
        %v795 = vpop.permute.xlu0 %794
        %796 = vrot.lane.b32.xlu0 %v737, 4
        %v797 = vpop.permute.xlu0 %796
        %798 = vrot.lane.b32.xlu0 %v738, 4
        %v799 = vpop.permute.xlu0 %798
        %800 = vrot.lane.b32.xlu0 %v739, 4
        %v801 = vpop.permute.xlu0 %800
        %802 = vrot.lane.b32.xlu0 %v740, 4
        %v803 = vpop.permute.xlu0 %802
        %804 = vrot.lane.b32.xlu0 %v741, 4
        %v805 = vpop.permute.xlu0 %804
        %806 = vrot.lane.b32.xlu0 %v742, 4
        %v807 = vpop.permute.xlu0 %806
        %808 = vrot.lane.b32.xlu0 %v743, 4
        %v809 = vpop.permute.xlu0 %808
        %842 = vrot.lane.b32.xlu0 %v746, 8
        %v843 = vpop.permute.xlu0 %842
        %844 = vrot.lane.b32.xlu0 %v747, 8
        %v845 = vpop.permute.xlu0 %844
        %846 = vrot.lane.b32.xlu0 %v748, 8
        %v847 = vpop.permute.xlu0 %846
        %848 = vrot.lane.b32.xlu0 %v749, 8
        %v849 = vpop.permute.xlu0 %848
        %850 = vrot.lane.b32.xlu0 %v750, 8
        %v851 = vpop.permute.xlu0 %850
        %852 = vrot.lane.b32.xlu0 %v751, 8
        %v853 = vpop.permute.xlu0 %852
        %854 = vrot.lane.b32.xlu0 %v752, 8
        %v855 = vpop.permute.xlu0 %854
        %856 = vrot.lane.b32.xlu0 %v753, 8
        %v857 = vpop.permute.xlu0 %856
        %858 = vrot.lane.b32.xlu0 %v754, 8
        %v859 = vpop.permute.xlu0 %858
        %860 = vrot.lane.b32.xlu0 %v755, 8
        %v861 = vpop.permute.xlu0 %860
        %862 = vrot.lane.b32.xlu0 %v756, 8
        %v863 = vpop.permute.xlu0 %862
        %864 = vrot.lane.b32.xlu0 %v757, 8
        %v865 = vpop.permute.xlu0 %864
        %866 = vrot.lane.b32.xlu0 %v758, 8
        %v867 = vpop.permute.xlu0 %866
        %868 = vrot.lane.b32.xlu0 %v759, 8
        %v869 = vpop.permute.xlu0 %868
        %870 = vrot.lane.b32.xlu0 %v760, 8
        %v871 = vpop.permute.xlu0 %870
        %872 = vrot.lane.b32.xlu0 %v761, 8
        %v873 = vpop.permute.xlu0 %872
        %vm890 = vcmask 31744
        %v891 = vsel %vm890, %v710, %v779
        %v892 = vsel %vm890, %v711, %v781
        %v893 = vsel %vm890, %v712, %v783
        %v894 = vsel %vm890, %v713, %v785
        %v895 = vsel %vm890, %v714, %v787
        %v896 = vsel %vm890, %v715, %v789
        %v897 = vsel %vm890, %v716, %v791
        %v898 = vsel %vm890, %v717, %v793
        %v899 = vsel %vm890, %v718, %v795
        %v900 = vsel %vm890, %v719, %v797
        %v901 = vsel %vm890, %v720, %v799
        %v902 = vsel %vm890, %v721, %v801
        %v903 = vsel %vm890, %v722, %v803
        %v904 = vsel %vm890, %v723, %v805
        %v905 = vsel %vm890, %v724, %v807
        %v906 = vsel %vm890, %v725, %v809
        %vm907 = vcmask 64512
        %v908 = vsel %vm907, %v891, %v843
        %v909 = vsel %vm907, %v892, %v845
        %v910 = vsel %vm907, %v893, %v847
        %v911 = vsel %vm907, %v894, %v849
        %v912 = vsel %vm907, %v895, %v851
        %v913 = vsel %vm907, %v896, %v853
        %v914 = vsel %vm907, %v897, %v855
        %v915 = vsel %vm907, %v898, %v857
        %v916 = vsel %vm907, %v899, %v859
        %v917 = vsel %vm907, %v900, %v861
        %v918 = vsel %vm907, %v901, %v863
        %v919 = vsel %vm907, %v902, %v865
        %v920 = vsel %vm907, %v903, %v867
        %v921 = vsel %vm907, %v904, %v869
        %v922 = vsel %vm907, %v905, %v871
        %v923 = vsel %vm907, %v906, %v873
        %v924 = vld [vmem:[%s2] sm:$0xff]
        %v925 = vld [vmem:[%s2 + $0x8] sm:$0xf]
        %v926 = vld [vmem:[%s3] sm:$0x1]
        %v928 = vlaneseq
        %v929 = vshrl.u32 %v928, 7
        %v930 = vsub.s32 0, %v929
        %v931 = vrot.slane %v926, %v930
        %vm933 = vcmask 97280
        %v935 = vsel %vm933, %v908, 0
        %v938 = vsel %vm933, %v909, 0
        %v941 = vsel %vm933, %v910, 0
        %v944 = vsel %vm933, %v911, 0
        %v947 = vsel %vm933, %v912, 0
        %v950 = vsel %vm933, %v913, 0
        %v953 = vsel %vm933, %v914, 0
        %v956 = vsel %vm933, %v915, 0
        %v959 = vsel %vm933, %v916, 0
        %v962 = vsel %vm933, %v917, 0
        %v965 = vsel %vm933, %v918, 0
        %v968 = vsel %vm933, %v919, 0
        %v971 = vsel %vm933, %v920, 0
        %v974 = vsel %vm933, %v921, 0
        %v977 = vsel %vm933, %v922, 0
        %v980 = vsel %vm933, %v923, 0
        %vm982 = vcmask 1043456
        %v984 = vsel %vm982, %v925, 0
        %986 = vmatprep.subr.mxu0 0.0
        %987 = vmatpush1.msra.mxu0 %v924
        %988 = vmatprep.subr.mxu0 0.0
        %989 = vmatpush1.msra.mxu0 %v984
        %990 = vmatprep.subr.mxu0 0.0
        %991 = vmatpush1.msra.mxu0 0.0
        %992 = vmatprep.subr.mxu0 0.0
        %993 = vmatpush1.msra.mxu0 0.0
        %994 = vmatprep.subr.mxu0 0.0
        %995 = vmatpush1.msra.mxu0 0.0
        %996 = vmatprep.subr.mxu0 0.0
        %997 = vmatpush1.msra.mxu0 0.0
        %998 = vmatprep.subr.mxu0 0.0
        %999 = vmatpush1.msra.mxu0 0.0
        %1000 = vmatprep.subr.mxu0 0.0
        %1001 = vmatpush1.msra.mxu0 0.0
        %1002 = vmatprep.subr.mxu0 0.0
        %1003 = vmatpush1.msra.mxu0 0.0
        %1004 = vmatprep.subr.mxu0 0.0
        %1005 = vmatpush1.msra.mxu0 0.0
        %1006 = vmatprep.subr.mxu0 0.0
        %1007 = vmatpush1.msra.mxu0 0.0
        %1008 = vmatprep.subr.mxu0 0.0
        %1009 = vmatpush1.msra.mxu0 0.0
        %1010 = vmatprep.subr.mxu0 0.0
        %1011 = vmatpush1.msra.mxu0 0.0
        %1012 = vmatprep.subr.mxu0 0.0
        %1013 = vmatpush1.msra.mxu0 0.0
        %1014 = vmatprep.subr.mxu0 0.0
        %1015 = vmatpush1.msra.mxu0 0.0
        %1016 = vmatprep.subr.mxu0 0.0
        %1017 = vmatpush1.msra.mxu0 0.0
        %1018 = vmatprep.subr.mxu0 0.0
        %1019 = vmatpush1.msra.mxu0 0.0
        %1020 = vmatprep.subr.mxu0 0.0
        %1021 = vmatpush1.msra.mxu0 0.0
        %1022 = vmatprep.subr.mxu0 0.0
        %1023 = vmatpush1.msra.mxu0 0.0
        %1024 = vmatprep.subr.mxu0 0.0
        %1025 = vmatpush1.msra.mxu0 0.0
        %1026 = vmatprep.subr.mxu0 0.0
        %1027 = vmatpush1.msra.mxu0 0.0
        %1028 = vmatprep.subr.mxu0 0.0
        %1029 = vmatpush1.msra.mxu0 0.0
        %1030 = vmatprep.subr.mxu0 0.0
        %1031 = vmatpush1.msra.mxu0 0.0
        %1032 = vmatprep.subr.mxu0 0.0
        %1033 = vmatpush1.msra.mxu0 0.0
        %1034 = vmatprep.subr.mxu0 0.0
        %1035 = vmatpush1.msra.mxu0 0.0
        %1036 = vmatprep.subr.mxu0 0.0
        %1037 = vmatpush1.msra.mxu0 0.0
        %1038 = vmatprep.subr.mxu0 0.0
        %1039 = vmatpush1.msra.mxu0 0.0
        %1040 = vmatprep.subr.mxu0 0.0
        %1041 = vmatpush1.msra.mxu0 0.0
        %1042 = vmatprep.subr.mxu0 0.0
        %1043 = vmatpush1.msra.mxu0 0.0
        %1044 = vmatprep.subr.mxu0 0.0
        %1045 = vmatpush1.msra.mxu0 0.0
        %1046 = vmatprep.subr.mxu0 0.0
        %1047 = vmatpush1.msra.mxu0 0.0
        %1048 = vmatprep.subr.mxu0 0.0
        %1049 = vmatpush1.msra.mxu0 0.0
        %1050 = vmatprep.mubr.f32.mxu0 0.0
        %1051 = vmatmul.mubr.f32.gmra.mrb[0].mxu0 %v935
        %v1052 = vpop.f32.mrb[0].mxu0
        %v1053 = vadd.f32 %v931, %v1052
        %v1054 = vpop.f32.mrb[0].mxu0
        %1055 = vmatprep.mubr.f32.mxu0 0.0
        %1056 = vmatmul.mubr.f32.gmra.mrb[0].mxu0 %v938
        %v1057 = vpop.f32.mrb[0].mxu0
        %v1058 = vadd.f32 %v931, %v1057
        %v1059 = vpop.f32.mrb[0].mxu0
        %1060 = vmatprep.mubr.f32.mxu0 0.0
        %1061 = vmatmul.mubr.f32.gmra.mrb[0].mxu0 %v941
        %v1062 = vpop.f32.mrb[0].mxu0
        %v1063 = vadd.f32 %v931, %v1062
        %v1064 = vpop.f32.mrb[0].mxu0
        %1065 = vmatprep.mubr.f32.mxu0 0.0
        %1066 = vmatmul.mubr.f32.gmra.mrb[0].mxu0 %v944
        %v1067 = vpop.f32.mrb[0].mxu0
        %v1068 = vadd.f32 %v931, %v1067
        %v1069 = vpop.f32.mrb[0].mxu0
        %1070 = vmatprep.mubr.f32.mxu0 0.0
        %1071 = vmatmul.mubr.f32.gmra.mrb[0].mxu0 %v947
        %v1072 = vpop.f32.mrb[0].mxu0
        %v1073 = vadd.f32 %v931, %v1072
        %v1074 = vpop.f32.mrb[0].mxu0
        %1075 = vmatprep.mubr.f32.mxu0 0.0
        %1076 = vmatmul.mubr.f32.gmra.mrb[0].mxu0 %v950
        %v1077 = vpop.f32.mrb[0].mxu0
        %v1078 = vadd.f32 %v931, %v1077
        %v1079 = vpop.f32.mrb[0].mxu0
        %1080 = vmatprep.mubr.f32.mxu0 0.0
        %1081 = vmatmul.mubr.f32.gmra.mrb[0].mxu0 %v953
        %v1082 = vpop.f32.mrb[0].mxu0
        %v1083 = vadd.f32 %v931, %v1082
        %v1084 = vpop.f32.mrb[0].mxu0
        %1085 = vmatprep.mubr.f32.mxu0 0.0
        %1086 = vmatmul.mubr.f32.gmra.mrb[0].mxu0 %v956
        %v1087 = vpop.f32.mrb[0].mxu0
        %v1088 = vadd.f32 %v931, %v1087
        %v1089 = vpop.f32.mrb[0].mxu0
        %1090 = vmatprep.mubr.f32.mxu0 0.0
        %1091 = vmatmul.mubr.f32.gmra.mrb[0].mxu0 %v959
        %v1092 = vpop.f32.mrb[0].mxu0
        %v1093 = vadd.f32 %v931, %v1092
        %v1094 = vpop.f32.mrb[0].mxu0
        %1095 = vmatprep.mubr.f32.mxu0 0.0
        %1096 = vmatmul.mubr.f32.gmra.mrb[0].mxu0 %v962
        %v1097 = vpop.f32.mrb[0].mxu0
        %v1098 = vadd.f32 %v931, %v1097
        %v1099 = vpop.f32.mrb[0].mxu0
        %1100 = vmatprep.mubr.f32.mxu0 0.0
        %1101 = vmatmul.mubr.f32.gmra.mrb[0].mxu0 %v965
        %v1102 = vpop.f32.mrb[0].mxu0
        %v1103 = vadd.f32 %v931, %v1102
        %v1104 = vpop.f32.mrb[0].mxu0
        %1105 = vmatprep.mubr.f32.mxu0 0.0
        %1106 = vmatmul.mubr.f32.gmra.mrb[0].mxu0 %v968
        %v1107 = vpop.f32.mrb[0].mxu0
        %v1108 = vadd.f32 %v931, %v1107
        %v1109 = vpop.f32.mrb[0].mxu0
        %1110 = vmatprep.mubr.f32.mxu0 0.0
        %1111 = vmatmul.mubr.f32.gmra.mrb[0].mxu0 %v971
        %v1112 = vpop.f32.mrb[0].mxu0
        %v1113 = vadd.f32 %v931, %v1112
        %v1114 = vpop.f32.mrb[0].mxu0
        %1115 = vmatprep.mubr.f32.mxu0 0.0
        %1116 = vmatmul.mubr.f32.gmra.mrb[0].mxu0 %v974
        %v1117 = vpop.f32.mrb[0].mxu0
        %v1118 = vadd.f32 %v931, %v1117
        %v1119 = vpop.f32.mrb[0].mxu0
        %1120 = vmatprep.mubr.f32.mxu0 0.0
        %1121 = vmatmul.mubr.f32.gmra.mrb[0].mxu0 %v977
        %v1122 = vpop.f32.mrb[0].mxu0
        %v1123 = vadd.f32 %v931, %v1122
        %v1124 = vpop.f32.mrb[0].mxu0
        %1125 = vmatprep.mubr.f32.mxu0 0.0
        %1126 = vmatmul.mubr.f32.gmra.mrb[0].mxu0 %v980
        %v1127 = vpop.f32.mrb[0].mxu0
        %v1128 = vadd.f32 %v931, %v1127
        %v1129 = vpop.f32.mrb[0].mxu0
        %1130 = vdwg.mxu0
        %v1131 = vmax.f32 %v1053, 0.0
        %v1132 = vmax.f32 %v1058, 0.0
        %v1133 = vmax.f32 %v1063, 0.0
        %v1134 = vmax.f32 %v1068, 0.0
        %v1135 = vmax.f32 %v1073, 0.0
        %v1136 = vmax.f32 %v1078, 0.0
        %v1137 = vmax.f32 %v1083, 0.0
        %v1138 = vmax.f32 %v1088, 0.0
        %v1139 = vmax.f32 %v1093, 0.0
        %v1140 = vmax.f32 %v1098, 0.0
        %v1141 = vmax.f32 %v1103, 0.0
        %v1142 = vmax.f32 %v1108, 0.0
        %v1143 = vmax.f32 %v1113, 0.0
        %v1144 = vmax.f32 %v1118, 0.0
        %v1145 = vmax.f32 %v1123, 0.0
        %v1146 = vmax.f32 %v1128, 0.0
        %1147 = vst [vmem:[%s211] sm:$0xff] %v1131
        %1148 = vst [vmem:[%s211 + $0x8] sm:$0xff] %v1132
        %1149 = vst [vmem:[%s211 + $0x10] sm:$0xff] %v1133
        %1150 = vst [vmem:[%s211 + $0x18] sm:$0xff] %v1134
        %1151 = vst [vmem:[%s211 + $0x20] sm:$0xff] %v1135
        %1152 = vst [vmem:[%s211 + $0x28] sm:$0xff] %v1136
        %1153 = vst [vmem:[%s211 + $0x30] sm:$0xff] %v1137
        %1154 = vst [vmem:[%s211 + $0x38] sm:$0xff] %v1138
        %1155 = vst [vmem:[%s211 + $0x40] sm:$0xff] %v1139
        %1156 = vst [vmem:[%s211 + $0x48] sm:$0xff] %v1140
        %1157 = vst [vmem:[%s211 + $0x50] sm:$0xff] %v1141
        %1158 = vst [vmem:[%s211 + $0x58] sm:$0xff] %v1142
        %1159 = vst [vmem:[%s211 + $0x60] sm:$0xff] %v1143
        %1160 = vst [vmem:[%s211 + $0x68] sm:$0xff] %v1144
        %1161 = vst [vmem:[%s211 + $0x70] sm:$0xff] %v1145
        %1162 = vst [vmem:[%s211 + $0x78] sm:$0xff] %v1146
      $region48: #{chebnet_forward.2} parent=35 // pred_fallthru
        _
      %s1163 = smul.u32 16, %s20
      %p1164 = scmp.lt.s32.totalorder %s1163, 15
      %s1165 = scalar_select %p1164, %s1163, 15
      %s1166 = smul.addr %s1165, 8
      %s1167 = scalar_lea.vmem %s4, %s1166
      // Predicated region
      $region49: #{chebnet_forward.2} parent=35 // pred_check
        %p1168 = pneg %p134
      $region50: #{chebnet_forward.2} parent=35 // pred_check_branch
        %1170 = sbr.rel (%p1168) target = $region52
      $region51: #{chebnet_forward.2} parent=35 // pred_region
        %s1171 = smul.u32 16, %s20
      $region52: #{chebnet_forward.2} parent=35 // pred_fallthru
        _
      // Predicated region
      $region53: #{chebnet_forward.2} parent=35 // pred_check
        %p1172 = pneg %p134
      $region54: #{chebnet_forward.2} parent=35 // pred_check_branch
        %1174 = sbr.rel (%p1172) target = $region56
      $region55: #{chebnet_forward.2} parent=35 // pred_region
        %s1175 = smul.u32 16, %s20
        %p1176 = scmp.lt.s32.totalorder %s1175, 15
        %s1177 = scalar_select %p1176, %s1175, 15
        %s1178 = smul.addr %s1177, 8
        %s1179 = scalar_lea.vmem %s4, %s1178
      $region56: #{chebnet_forward.2} parent=35 // pred_fallthru
        _
    $region36: #{chebnet_forward.2} parent=5 // pred_fallthru
      _
    %p1180 = scmp.le.s32.totalorder 2, %s10
    // Predicated region
    $region57: #{chebnet_forward.2} parent=5 // pred_check
      %p1181 = pneg %p1180
    $region58: #{chebnet_forward.2} parent=5 // pred_check_branch
      %1183 = sbr.rel (%p1181) target = $region60
    $region59: #{chebnet_forward.2} parent=5 // pred_region
      %s1184 = ssub.s32 %s10, 2
    $region60: #{chebnet_forward.2} parent=5 // pred_fallthru
      _
  $region6: #{chebnet_forward.2} parent=0 // loop_footer
    %s14 = sadd.s32 1, %s10
  $region7: #{chebnet_forward.2} parent=0 // loop_footer_branch
    %9 = sbr.rel target = $region3
  $region8: #{chebnet_forward.2} parent=0 // loop_exit
    _

// kernel: chebnet_forward.3
$region0: #{chebnet_forward.3}
  #allocation0 [shape = 'u32[]', space=smem, size = 0x4, offset = 0x4, fixed_abs, tag = 'smem constant byte address 0x4 - core index']
  #allocation1 [shape = 'u32[144,128]{1,0:T(1,128)}', space=vmem, size = 0x12000, scoped, tag = 'internal scratch']
  #allocation2 [shape = 'f32[3,128,128]{2,1,0:T(8,128)}', space=vmem, size = 0x30000, scoped, tag = 'scratch operand']
  %s0 = inlined_call_operand.vmem [shape: bf16[128,128], index: 0, kind: input, shape index: {}]
  %s1 = inlined_call_operand.vmem [shape: f32[128,128], index: 1, kind: input, shape index: {}]
  %s2 = inlined_call_operand.vmem [shape: f32[384,128], index: 2, kind: input, shape index: {}]
  %s3 = inlined_call_operand.vmem [shape: f32[1,128], index: 3, kind: input, shape index: {}]
  %s4 = inlined_call_operand.vmem [shape: f32[128,128], index: 4, kind: output, shape index: {}]
  %s5 = sld [smem:[#allocation0]]
  $region61: #{chebnet_forward.3} parent=0
    _
  %s7 = ssub.s32 1, %s5
  %s8 = scalar_select 0, %s7, %s5
  loop: start=0, step=1, limit=4
  $region2: #{chebnet_forward.3} parent=0 // loop_pre_header
    _
  $region3: #{chebnet_forward.3} parent=0 // loop_header
    %s10 = sphi 0, %s14
    %p11 = scmp.ge.s32.totalorder %s10, 4
    %s17 = sphi 0, %s29
    %s18 = sphi 0, %s25
    %s19 = sphi 0, %s17
    %s20 = sphi 0, %s18
    %s21 = sphi 0, %s19
    %s22 = sphi 0, %s20
    %s32 = sphi 0, %s34
    %s35 = sphi 0, %s32
    %s36 = sphi 0, %s35
    %s52 = sphi 0, %s36
    %s56 = sphi 0, %s56
    %s58 = sphi 0, %s56
    %s59 = sphi 0, %s58
    %s73 = sphi 0, %s59
    %s77 = sphi 0, %s77
    %s79 = sphi 0, %s77
    %s80 = sphi 0, %s79
    %s94 = sphi 0, %s80
    %s98 = sphi 0, %s98
    %s100 = sphi 0, %s98
    %s101 = sphi 0, %s100
    %s115 = sphi 0, %s101
    %s121 = sphi 0, %s123
    %s124 = sphi 0, %s121
    %s125 = sphi 0, %s124
    %s141 = sphi 0, %s125
  $region4: #{chebnet_forward.3} parent=0 // loop_header_branch
    %13 = sbr.rel (%p11) target = $region8
  $region5: #{chebnet_forward.3} parent=0 // loop_body
    %s15 = ssub.s32 %s10, 1
    %s16 = ssub.s32 %s10, 2
    %s23 = sadd.s32 1, %s18
    %p24 = scmp.ge.s32.totalorder %s23, 1
    %s25 = scalar_select %p24, 0, %s23
    %s26 = sadd.s32 1, %s17
    %s27 = scalar_select %p24, %s26, %s17
    %p28 = scmp.ge.s32.totalorder %s27, 2
    %s29 = scalar_select %p28, 0, %s27
    %s30 = ssub.s32 %s18, %s25
    %p31 = scmp.eq.s32.totalorder %s30, 0
    %s33 = sadd.s32 %s32, 1
    %s34 = scalar_select %p31, %s32, %s33
    %p37 = pneg %p31
    %p38 = scmp.eq.s32.totalorder %s10, 1
    %p39 = por %p37, %p38
    %p40 = scmp.ne.s32.totalorder %s32, %s35
    %p41 = scmp.eq.s32.totalorder %s10, 0
    %p42 = por %p40, %p41
    %p43 = scmp.ne.s32.totalorder %s32, %s35
    %p44 = scmp.eq.s32.totalorder %s15, 1
    %p45 = por %p43, %p44
    %p46 = scmp.ne.s32.totalorder %s35, %s36
    %p47 = scmp.eq.s32.totalorder %s15, 0
    %p48 = por %p46, %p47
    %p49 = scmp.ne.s32.totalorder %s35, %s36
    %p50 = scmp.eq.s32.totalorder %s16, 1
    %p51 = por %p49, %p50
    %p53 = scmp.ne.s32.totalorder %s36, %s52
    %p54 = scmp.eq.s32.totalorder %s16, 0
    %p55 = por %p53, %p54
    %s57 = sadd.s32 %s56, 1
    %p60 = scmp.eq.s32.totalorder %s10, 1
    %p61 = scmp.ne.s32.totalorder %s56, %s58
    %p62 = scmp.eq.s32.totalorder %s10, 0
    %p63 = por %p61, %p62
    %p64 = scmp.ne.s32.totalorder %s56, %s58
    %p65 = scmp.eq.s32.totalorder %s15, 1
    %p66 = por %p64, %p65
    %p67 = scmp.ne.s32.totalorder %s58, %s59
    %p68 = scmp.eq.s32.totalorder %s15, 0
    %p69 = por %p67, %p68
    %p70 = scmp.ne.s32.totalorder %s58, %s59
    %p71 = scmp.eq.s32.totalorder %s16, 1
    %p72 = por %p70, %p71
    %p74 = scmp.ne.s32.totalorder %s59, %s73
    %p75 = scmp.eq.s32.totalorder %s16, 0
    %p76 = por %p74, %p75
    %s78 = sadd.s32 %s77, 1
    %p81 = scmp.eq.s32.totalorder %s10, 1
    %p82 = scmp.ne.s32.totalorder %s77, %s79
    %p83 = scmp.eq.s32.totalorder %s10, 0
    %p84 = por %p82, %p83
    %p85 = scmp.ne.s32.totalorder %s77, %s79
    %p86 = scmp.eq.s32.totalorder %s15, 1
    %p87 = por %p85, %p86
    %p88 = scmp.ne.s32.totalorder %s79, %s80
    %p89 = scmp.eq.s32.totalorder %s15, 0
    %p90 = por %p88, %p89
    %p91 = scmp.ne.s32.totalorder %s79, %s80
    %p92 = scmp.eq.s32.totalorder %s16, 1
    %p93 = por %p91, %p92
    %p95 = scmp.ne.s32.totalorder %s80, %s94
    %p96 = scmp.eq.s32.totalorder %s16, 0
    %p97 = por %p95, %p96
    %s99 = sadd.s32 %s98, 1
    %p102 = scmp.eq.s32.totalorder %s10, 1
    %p103 = scmp.ne.s32.totalorder %s98, %s100
    %p104 = scmp.eq.s32.totalorder %s10, 0
    %p105 = por %p103, %p104
    %p106 = scmp.ne.s32.totalorder %s98, %s100
    %p107 = scmp.eq.s32.totalorder %s15, 1
    %p108 = por %p106, %p107
    %p109 = scmp.ne.s32.totalorder %s100, %s101
    %p110 = scmp.eq.s32.totalorder %s15, 0
    %p111 = por %p109, %p110
    %p112 = scmp.ne.s32.totalorder %s100, %s101
    %p113 = scmp.eq.s32.totalorder %s16, 1
    %p114 = por %p112, %p113
    %p116 = scmp.ne.s32.totalorder %s101, %s115
    %p117 = scmp.eq.s32.totalorder %s16, 0
    %p118 = por %p116, %p117
    %s119 = ssub.s32 %s18, %s25
    %p120 = scmp.eq.s32.totalorder %s119, 0
    %s122 = sadd.s32 %s121, 1
    %s123 = scalar_select %p120, %s121, %s122
    %p126 = pneg %p120
    %p127 = scmp.eq.s32.totalorder %s10, 1
    %p128 = por %p126, %p127
    %p129 = scmp.ne.s32.totalorder %s121, %s124
    %p130 = scmp.eq.s32.totalorder %s10, 0
    %p131 = por %p129, %p130
    %p132 = scmp.ne.s32.totalorder %s121, %s124
    %p133 = scmp.eq.s32.totalorder %s15, 1
    %p134 = por %p132, %p133
    %p135 = scmp.ne.s32.totalorder %s124, %s125
    %p136 = scmp.eq.s32.totalorder %s15, 0
    %p137 = por %p135, %p136
    %p138 = scmp.ne.s32.totalorder %s124, %s125
    %p139 = scmp.eq.s32.totalorder %s16, 1
    %p140 = por %p138, %p139
    %p142 = scmp.ne.s32.totalorder %s125, %s141
    %p143 = scmp.eq.s32.totalorder %s16, 0
    %p144 = por %p142, %p143
    %p145 = scmp.le.s32.totalorder 1, %s10
    %p146 = scmp.lt.s32.totalorder %s10, 3
    %p147 = pnand %p145, %p146
    %p148 = pneg %p147
    // Predicated region
    $region9: #{chebnet_forward.3} parent=5 // pred_check
      _
    $region10: #{chebnet_forward.3} parent=5 // pred_check_branch
      %150 = sbr.rel (%p147) target = $region12
    $region11: #{chebnet_forward.3} parent=5 // pred_region
      %s151 = ssub.s32 %s10, 1
      // Predicated region
      $region13: #{chebnet_forward.3} parent=11 // pred_check
        %p152 = pneg %p48
      $region14: #{chebnet_forward.3} parent=11 // pred_check_branch
        %154 = sbr.rel (%p152) target = $region16
      $region15: #{chebnet_forward.3} parent=11 // pred_region
        %s155 = smul.u32 16, %s20
        %p156 = scmp.lt.s32.totalorder %s155, 15
        %s157 = scalar_select %p156, %s155, 15
        %s158 = smul.addr %s157, 4
        %s159 = scalar_lea.vmem %s0, %s158
        %s160 = smul.u32 16, %s20
      $region16: #{chebnet_forward.3} parent=11 // pred_fallthru
        _
      // Predicated region
      $region17: #{chebnet_forward.3} parent=11 // pred_check
        %p161 = pneg %p69
      $region18: #{chebnet_forward.3} parent=11 // pred_check_branch
        %163 = sbr.rel (%p161) target = $region20
      $region19: #{chebnet_forward.3} parent=11 // pred_region
        _
      $region20: #{chebnet_forward.3} parent=11 // pred_fallthru
        _
      // Predicated region
      $region21: #{chebnet_forward.3} parent=11 // pred_check
        %p164 = pneg %p90
      $region22: #{chebnet_forward.3} parent=11 // pred_check_branch
        %166 = sbr.rel (%p164) target = $region24
      $region23: #{chebnet_forward.3} parent=11 // pred_region
        _
      $region24: #{chebnet_forward.3} parent=11 // pred_fallthru
        _
      // Predicated region
      $region25: #{chebnet_forward.3} parent=11 // pred_check
        %p167 = pneg %p111
      $region26: #{chebnet_forward.3} parent=11 // pred_check_branch
        %169 = sbr.rel (%p167) target = $region28
      $region27: #{chebnet_forward.3} parent=11 // pred_region
        _
      $region28: #{chebnet_forward.3} parent=11 // pred_fallthru
        _
    $region12: #{chebnet_forward.3} parent=5 // pred_fallthru
      _
    %p170 = scmp.lt.s32.totalorder %s10, 2
    // Predicated region
    $region29: #{chebnet_forward.3} parent=5 // pred_check
      %p171 = pneg %p170
    $region30: #{chebnet_forward.3} parent=5 // pred_check_branch
      %173 = sbr.rel (%p171) target = $region32
    $region31: #{chebnet_forward.3} parent=5 // pred_region
      _
    $region32: #{chebnet_forward.3} parent=5 // pred_fallthru
      _
    %p174 = scmp.le.s32.totalorder 1, %s10
    %p175 = scmp.lt.s32.totalorder %s10, 3
    %p176 = pnand %p174, %p175
    %p177 = pneg %p176
    // Predicated region
    $region33: #{chebnet_forward.3} parent=5 // pred_check
      _
    $region34: #{chebnet_forward.3} parent=5 // pred_check_branch
      %179 = sbr.rel (%p176) target = $region36
    $region35: #{chebnet_forward.3} parent=5 // pred_region
      %s180 = ssub.s32 %s10, 1
      %s181 = smul.u32 16, %s20
      %p182 = scmp.lt.s32.totalorder %s181, 15
      %s183 = scalar_select %p182, %s181, 15
      %s184 = smul.addr %s183, 4
      %s185 = scalar_lea.vmem %s0, %s184
      %p186 = pneg %p48
      %p187 = pneg %p45
      %p188 = pneg %p69
      %p189 = pneg %p66
      %p190 = pneg %p90
      %p191 = pneg %p87
      %p192 = pneg %p111
      %p193 = pneg %p108
      %p194 = pneg %p137
      %p195 = pneg %p134
      %s196 = smul.u32 16, %s20
      %p197 = scmp.lt.s32.totalorder %s196, 15
      %s198 = scalar_select %p197, %s196, 15
      %s199 = smul.addr %s198, 8
      %s200 = scalar_lea.vmem %s4, %s199
      %s201 = smul.u32 16, %s20
      %p202 = scmp.lt.s32.totalorder %s201, 15
      %s203 = scalar_select %p202, %s201, 15
      %s204 = smul.addr %s203, 4
      %s205 = scalar_lea.vmem %s0, %s204
      %s206 = smul.u32 16, %s20
      %s207 = smul.u32 16, %s20
      %p208 = scmp.lt.s32.totalorder %s207, 15
      %s209 = scalar_select %p208, %s207, 15
      %s210 = smul.addr %s209, 8
      %s211 = scalar_lea.vmem %s4, %s210
      %s212 = smul.u32 16, %s20
      %s214 = smul.u32 %s20, 128
      %v215 = vld [vmem:[%s205] sm:$0xf]
      %v216 = vld [vmem:[%s205 + $0x4] sm:$0xf]
      %v217 = vld [vmem:[%s205 + $0x8] sm:$0xf]
      %v218 = vld [vmem:[%s205 + $0xc] sm:$0xf]
      %v219 = vld [vmem:[%s205 + $0x10] sm:$0xf]
      %v220 = vld [vmem:[%s205 + $0x14] sm:$0xf]
      %v221 = vld [vmem:[%s205 + $0x18] sm:$0xf]
      %v222 = vld [vmem:[%s205 + $0x1c] sm:$0xf]
      %v223 = vld [vmem:[%s205 + $0x20] sm:$0xf]
      %v224 = vld [vmem:[%s205 + $0x24] sm:$0xf]
      %v225 = vld [vmem:[%s205 + $0x28] sm:$0xf]
      %v226 = vld [vmem:[%s205 + $0x2c] sm:$0xf]
      %v227 = vld [vmem:[%s205 + $0x30] sm:$0xf]
      %v228 = vld [vmem:[%s205 + $0x34] sm:$0xf]
      %v229 = vld [vmem:[%s205 + $0x38] sm:$0xf]
      %v230 = vld [vmem:[%s205 + $0x3c] sm:$0xf]
      %p231 = scmp.eq.s32.totalorder %s19, 0
      // Predicated region
      $region37: #{chebnet_forward.3} parent=35 // pred_check
        %p232 = pneg %p231
      $region38: #{chebnet_forward.3} parent=35 // pred_check_branch
        %234 = sbr.rel (%p232) target = $region40
      $region39: #{chebnet_forward.3} parent=35 // pred_region
        %s235 = scalar_lea.vmem %s1, %s214
        %v236 = vld [vmem:[%s235] sm:$0xff]
        %v237 = vld [vmem:[%s235 + $0x8] sm:$0xff]
        %v238 = vld [vmem:[%s235 + $0x10] sm:$0xff]
        %v239 = vld [vmem:[%s235 + $0x18] sm:$0xff]
        %v240 = vld [vmem:[%s235 + $0x20] sm:$0xff]
        %v241 = vld [vmem:[%s235 + $0x28] sm:$0xff]
        %v242 = vld [vmem:[%s235 + $0x30] sm:$0xff]
        %v243 = vld [vmem:[%s235 + $0x38] sm:$0xff]
        %v244 = vld [vmem:[%s235 + $0x40] sm:$0xff]
        %v245 = vld [vmem:[%s235 + $0x48] sm:$0xff]
        %v246 = vld [vmem:[%s235 + $0x50] sm:$0xff]
        %v247 = vld [vmem:[%s235 + $0x58] sm:$0xff]
        %v248 = vld [vmem:[%s235 + $0x60] sm:$0xff]
        %v249 = vld [vmem:[%s235 + $0x68] sm:$0xff]
        %v250 = vld [vmem:[%s235 + $0x70] sm:$0xff]
        %v251 = vld [vmem:[%s235 + $0x78] sm:$0xff]
        %s252 = scalar_lea.vmem [#allocation2], %s214
        %253 = vst [vmem:[%s252] sm:$0xff] %v236
        %254 = vst [vmem:[%s252 + $0x8] sm:$0xff] %v237
        %255 = vst [vmem:[%s252 + $0x10] sm:$0xff] %v238
        %256 = vst [vmem:[%s252 + $0x18] sm:$0xff] %v239
        %257 = vst [vmem:[%s252 + $0x20] sm:$0xff] %v240
        %258 = vst [vmem:[%s252 + $0x28] sm:$0xff] %v241
        %259 = vst [vmem:[%s252 + $0x30] sm:$0xff] %v242
        %260 = vst [vmem:[%s252 + $0x38] sm:$0xff] %v243
        %261 = vst [vmem:[%s252 + $0x40] sm:$0xff] %v244
        %262 = vst [vmem:[%s252 + $0x48] sm:$0xff] %v245
        %263 = vst [vmem:[%s252 + $0x50] sm:$0xff] %v246
        %264 = vst [vmem:[%s252 + $0x58] sm:$0xff] %v247
        %265 = vst [vmem:[%s252 + $0x60] sm:$0xff] %v248
        %266 = vst [vmem:[%s252 + $0x68] sm:$0xff] %v249
        %267 = vst [vmem:[%s252 + $0x70] sm:$0xff] %v250
        %268 = vst [vmem:[%s252 + $0x78] sm:$0xff] %v251
        %v269 = vld [vmem:[%s1] sm:$0xff]
        %v270 = vld [vmem:[%s1 + $0x8] sm:$0xff]
        %v271 = vld [vmem:[%s1 + $0x10] sm:$0xff]
        %v272 = vld [vmem:[%s1 + $0x18] sm:$0xff]
        %v273 = vld [vmem:[%s1 + $0x20] sm:$0xff]
        %v274 = vld [vmem:[%s1 + $0x28] sm:$0xff]
        %v275 = vld [vmem:[%s1 + $0x30] sm:$0xff]
        %v276 = vld [vmem:[%s1 + $0x38] sm:$0xff]
        %v277 = vld [vmem:[%s1 + $0x40] sm:$0xff]
        %v278 = vld [vmem:[%s1 + $0x48] sm:$0xff]
        %v279 = vld [vmem:[%s1 + $0x50] sm:$0xff]
        %v280 = vld [vmem:[%s1 + $0x58] sm:$0xff]
        %v281 = vld [vmem:[%s1 + $0x60] sm:$0xff]
        %v282 = vld [vmem:[%s1 + $0x68] sm:$0xff]
        %v283 = vld [vmem:[%s1 + $0x70] sm:$0xff]
        %v284 = vld [vmem:[%s1 + $0x78] sm:$0xff]
        %v285 = vpack.c.bf16 %v270, %v269
        %v286 = vpack.c.bf16 %v272, %v271
        %v287 = vpack.c.bf16 %v274, %v273
        %v288 = vpack.c.bf16 %v276, %v275
        %v289 = vpack.c.bf16 %v278, %v277
        %v290 = vpack.c.bf16 %v280, %v279
        %v291 = vpack.c.bf16 %v282, %v281
        %v292 = vpack.c.bf16 %v284, %v283
        %v309 = vunpack.c.l.b16 %v215
        %v310 = vunpack.c.l.b16 %v216
        %v311 = vunpack.c.l.b16 %v217
        %v312 = vunpack.c.l.b16 %v218
        %v313 = vunpack.c.l.b16 %v219
        %v314 = vunpack.c.l.b16 %v220
        %v315 = vunpack.c.l.b16 %v221
        %v316 = vunpack.c.l.b16 %v222
        %v317 = vunpack.c.l.b16 %v223
        %v318 = vunpack.c.l.b16 %v224
        %v319 = vunpack.c.l.b16 %v225
        %v320 = vunpack.c.l.b16 %v226
        %v321 = vunpack.c.l.b16 %v227
        %v322 = vunpack.c.l.b16 %v228
        %v323 = vunpack.c.l.b16 %v229
        %v324 = vunpack.c.l.b16 %v230
        %v325 = vpack.c.b16 %v310, %v309
        %v326 = vpack.c.b16 %v312, %v311
        %v327 = vpack.c.b16 %v314, %v313
        %v328 = vpack.c.b16 %v316, %v315
        %v329 = vpack.c.b16 %v318, %v317
        %v330 = vpack.c.b16 %v320, %v319
        %v331 = vpack.c.b16 %v322, %v321
        %v332 = vpack.c.b16 %v324, %v323
        %341 = vmatprep.subr.bf16.mxu0 0
        %342 = vmatpush1.bf16.msra.mxu0 %v285
        %343 = vmatprep.subr.bf16.mxu0 0
        %344 = vmatpush1.bf16.msra.mxu0 %v286
        %345 = vmatprep.subr.bf16.mxu0 0
        %346 = vmatpush1.bf16.msra.mxu0 %v287
        %347 = vmatprep.subr.bf16.mxu0 0
        %348 = vmatpush1.bf16.msra.mxu0 %v288
        %349 = vmatprep.subr.bf16.mxu0 0
        %350 = vmatpush1.bf16.msra.mxu0 %v289
        %351 = vmatprep.subr.bf16.mxu0 0
        %352 = vmatpush1.bf16.msra.mxu0 %v290
        %353 = vmatprep.subr.bf16.mxu0 0
        %354 = vmatpush1.bf16.msra.mxu0 %v291
        %355 = vmatprep.subr.bf16.mxu0 0
        %356 = vmatpush1.bf16.msra.mxu0 %v292
        %357 = vmatprep.subr.bf16.mxu0 0
        %358 = vmatpush1.bf16.msra.mxu0 0
        %359 = vmatprep.subr.bf16.mxu0 0
        %360 = vmatpush1.bf16.msra.mxu0 0
        %361 = vmatprep.subr.bf16.mxu0 0
        %362 = vmatpush1.bf16.msra.mxu0 0
        %363 = vmatprep.subr.bf16.mxu0 0
        %364 = vmatpush1.bf16.msra.mxu0 0
        %365 = vmatprep.subr.bf16.mxu0 0
        %366 = vmatpush1.bf16.msra.mxu0 0
        %367 = vmatprep.subr.bf16.mxu0 0
        %368 = vmatpush1.bf16.msra.mxu0 0
        %369 = vmatprep.subr.bf16.mxu0 0
        %370 = vmatpush1.bf16.msra.mxu0 0
        %371 = vmatprep.subr.bf16.mxu0 0
        %372 = vmatpush1.bf16.msra.mxu0 0
        %373 = vmatprep.mubr.bf16.mxu0 0
        %374 = vmatmul.mubr.bf16.gmra.mrb[0].mxu0 %v325
        %v375 = vpop.f32.mrb[0].mxu0
        %v376 = vadd.f32 0.0, %v375
        %v377 = vpop.f32.mrb[0].mxu0
        %v378 = vpop.f32.mrb[0].mxu0
        %v379 = vadd.f32 0.0, %v378
        %v380 = vpop.f32.mrb[0].mxu0
        %381 = vmatprep.mubr.bf16.mxu0 0
        %382 = vmatmul.mubr.bf16.gmra.mrb[0].mxu0 %v326
        %v383 = vpop.f32.mrb[0].mxu0
        %v384 = vadd.f32 0.0, %v383
        %v385 = vpop.f32.mrb[0].mxu0
        %v386 = vpop.f32.mrb[0].mxu0
        %v387 = vadd.f32 0.0, %v386
        %v388 = vpop.f32.mrb[0].mxu0
        %389 = vmatprep.mubr.bf16.mxu0 0
        %390 = vmatmul.mubr.bf16.gmra.mrb[0].mxu0 %v327
        %v391 = vpop.f32.mrb[0].mxu0
        %v392 = vadd.f32 0.0, %v391
        %v393 = vpop.f32.mrb[0].mxu0
        %v394 = vpop.f32.mrb[0].mxu0
        %v395 = vadd.f32 0.0, %v394
        %v396 = vpop.f32.mrb[0].mxu0
        %397 = vmatprep.mubr.bf16.mxu0 0
        %398 = vmatmul.mubr.bf16.gmra.mrb[0].mxu0 %v328
        %v399 = vpop.f32.mrb[0].mxu0
        %v400 = vadd.f32 0.0, %v399
        %v401 = vpop.f32.mrb[0].mxu0
        %v402 = vpop.f32.mrb[0].mxu0
        %v403 = vadd.f32 0.0, %v402
        %v404 = vpop.f32.mrb[0].mxu0
        %405 = vmatprep.mubr.bf16.mxu0 0
        %406 = vmatmul.mubr.bf16.gmra.mrb[0].mxu0 %v329
        %v407 = vpop.f32.mrb[0].mxu0
        %v408 = vadd.f32 0.0, %v407
        %v409 = vpop.f32.mrb[0].mxu0
        %v410 = vpop.f32.mrb[0].mxu0
        %v411 = vadd.f32 0.0, %v410
        %v412 = vpop.f32.mrb[0].mxu0
        %413 = vmatprep.mubr.bf16.mxu0 0
        %414 = vmatmul.mubr.bf16.gmra.mrb[0].mxu0 %v330
        %v415 = vpop.f32.mrb[0].mxu0
        %v416 = vadd.f32 0.0, %v415
        %v417 = vpop.f32.mrb[0].mxu0
        %v418 = vpop.f32.mrb[0].mxu0
        %v419 = vadd.f32 0.0, %v418
        %v420 = vpop.f32.mrb[0].mxu0
        %421 = vmatprep.mubr.bf16.mxu0 0
        %422 = vmatmul.mubr.bf16.gmra.mrb[0].mxu0 %v331
        %v423 = vpop.f32.mrb[0].mxu0
        %v424 = vadd.f32 0.0, %v423
        %v425 = vpop.f32.mrb[0].mxu0
        %v426 = vpop.f32.mrb[0].mxu0
        %v427 = vadd.f32 0.0, %v426
        %v428 = vpop.f32.mrb[0].mxu0
        %429 = vmatprep.mubr.bf16.mxu0 0
        %430 = vmatmul.mubr.bf16.gmra.mrb[0].mxu0 %v332
        %v431 = vpop.f32.mrb[0].mxu0
        %v432 = vadd.f32 0.0, %v431
        %v433 = vpop.f32.mrb[0].mxu0
        %v434 = vpop.f32.mrb[0].mxu0
        %v435 = vadd.f32 0.0, %v434
        %v436 = vpop.f32.mrb[0].mxu0
        %437 = vdwg.mxu0
        %s438 = sadd.s32 %s214, 128
        %s439 = scalar_lea.vmem [#allocation2], %s438
        %440 = vst [vmem:[%s439] sm:$0xff] %v376
        %441 = vst [vmem:[%s439 + $0x8] sm:$0xff] %v379
        %442 = vst [vmem:[%s439 + $0x10] sm:$0xff] %v384
        %443 = vst [vmem:[%s439 + $0x18] sm:$0xff] %v387
        %444 = vst [vmem:[%s439 + $0x20] sm:$0xff] %v392
        %445 = vst [vmem:[%s439 + $0x28] sm:$0xff] %v395
        %446 = vst [vmem:[%s439 + $0x30] sm:$0xff] %v400
        %447 = vst [vmem:[%s439 + $0x38] sm:$0xff] %v403
        %448 = vst [vmem:[%s439 + $0x40] sm:$0xff] %v408
        %449 = vst [vmem:[%s439 + $0x48] sm:$0xff] %v411
        %450 = vst [vmem:[%s439 + $0x50] sm:$0xff] %v416
        %451 = vst [vmem:[%s439 + $0x58] sm:$0xff] %v419
        %452 = vst [vmem:[%s439 + $0x60] sm:$0xff] %v424
        %453 = vst [vmem:[%s439 + $0x68] sm:$0xff] %v427
        %454 = vst [vmem:[%s439 + $0x70] sm:$0xff] %v432
        %455 = vst [vmem:[%s439 + $0x78] sm:$0xff] %v435
      $region40: #{chebnet_forward.3} parent=35 // pred_fallthru
        _
      %p456 = scmp.gt.s32.totalorder %s19, 0
      // Predicated region
      $region41: #{chebnet_forward.3} parent=35 // pred_check
        %p457 = pneg %p456
      $region42: #{chebnet_forward.3} parent=35 // pred_check_branch
        %459 = sbr.rel (%p457) target = $region44
      $region43: #{chebnet_forward.3} parent=35 // pred_region
        %s460 = smul.u32 %s19, 128
        %s461 = scalar_lea.vmem [#allocation2], %s460
        %v462 = vld [vmem:[%s461] sm:$0xff]
        %v463 = vld [vmem:[%s461 + $0x8] sm:$0xff]
        %v464 = vld [vmem:[%s461 + $0x10] sm:$0xff]
        %v465 = vld [vmem:[%s461 + $0x18] sm:$0xff]
        %v466 = vld [vmem:[%s461 + $0x20] sm:$0xff]
        %v467 = vld [vmem:[%s461 + $0x28] sm:$0xff]
        %v468 = vld [vmem:[%s461 + $0x30] sm:$0xff]
        %v469 = vld [vmem:[%s461 + $0x38] sm:$0xff]
        %v470 = vld [vmem:[%s461 + $0x40] sm:$0xff]
        %v471 = vld [vmem:[%s461 + $0x48] sm:$0xff]
        %v472 = vld [vmem:[%s461 + $0x50] sm:$0xff]
        %v473 = vld [vmem:[%s461 + $0x58] sm:$0xff]
        %v474 = vld [vmem:[%s461 + $0x60] sm:$0xff]
        %v475 = vld [vmem:[%s461 + $0x68] sm:$0xff]
        %v476 = vld [vmem:[%s461 + $0x70] sm:$0xff]
        %v477 = vld [vmem:[%s461 + $0x78] sm:$0xff]
        %v478 = vpack.c.bf16 %v463, %v462
        %v479 = vpack.c.bf16 %v465, %v464
        %v480 = vpack.c.bf16 %v467, %v466
        %v481 = vpack.c.bf16 %v469, %v468
        %v482 = vpack.c.bf16 %v471, %v470
        %v483 = vpack.c.bf16 %v473, %v472
        %v484 = vpack.c.bf16 %v475, %v474
        %v485 = vpack.c.bf16 %v477, %v476
        %s486 = ssub.s32 %s19, 1
        %s487 = smul.u32 %s486, 128
        %s488 = sadd.s32 %s214, %s487
        %s489 = scalar_lea.vmem [#allocation2], %s488
        %v490 = vld [vmem:[%s489] sm:$0xff]
        %v491 = vld [vmem:[%s489 + $0x8] sm:$0xff]
        %v492 = vld [vmem:[%s489 + $0x10] sm:$0xff]
        %v493 = vld [vmem:[%s489 + $0x18] sm:$0xff]
        %v494 = vld [vmem:[%s489 + $0x20] sm:$0xff]
        %v495 = vld [vmem:[%s489 + $0x28] sm:$0xff]
        %v496 = vld [vmem:[%s489 + $0x30] sm:$0xff]
        %v497 = vld [vmem:[%s489 + $0x38] sm:$0xff]
        %v498 = vld [vmem:[%s489 + $0x40] sm:$0xff]
        %v499 = vld [vmem:[%s489 + $0x48] sm:$0xff]
        %v500 = vld [vmem:[%s489 + $0x50] sm:$0xff]
        %v501 = vld [vmem:[%s489 + $0x58] sm:$0xff]
        %v502 = vld [vmem:[%s489 + $0x60] sm:$0xff]
        %v503 = vld [vmem:[%s489 + $0x68] sm:$0xff]
        %v504 = vld [vmem:[%s489 + $0x70] sm:$0xff]
        %v505 = vld [vmem:[%s489 + $0x78] sm:$0xff]
        %v522 = vunpack.c.l.b16 %v215
        %v523 = vunpack.c.l.b16 %v216
        %v524 = vunpack.c.l.b16 %v217
        %v525 = vunpack.c.l.b16 %v218
        %v526 = vunpack.c.l.b16 %v219
        %v527 = vunpack.c.l.b16 %v220
        %v528 = vunpack.c.l.b16 %v221
        %v529 = vunpack.c.l.b16 %v222
        %v530 = vunpack.c.l.b16 %v223
        %v531 = vunpack.c.l.b16 %v224
        %v532 = vunpack.c.l.b16 %v225
        %v533 = vunpack.c.l.b16 %v226
        %v534 = vunpack.c.l.b16 %v227
        %v535 = vunpack.c.l.b16 %v228
        %v536 = vunpack.c.l.b16 %v229
        %v537 = vunpack.c.l.b16 %v230
        %v538 = vpack.c.b16 %v523, %v522
        %v539 = vpack.c.b16 %v525, %v524
        %v540 = vpack.c.b16 %v527, %v526
        %v541 = vpack.c.b16 %v529, %v528
        %v542 = vpack.c.b16 %v531, %v530
        %v543 = vpack.c.b16 %v533, %v532
        %v544 = vpack.c.b16 %v535, %v534
        %v545 = vpack.c.b16 %v537, %v536
        %554 = vmatprep.subr.bf16.mxu0 0
        %555 = vmatpush1.bf16.msra.mxu0 %v478
        %556 = vmatprep.subr.bf16.mxu0 0
        %557 = vmatpush1.bf16.msra.mxu0 %v479
        %558 = vmatprep.subr.bf16.mxu0 0
        %559 = vmatpush1.bf16.msra.mxu0 %v480
        %560 = vmatprep.subr.bf16.mxu0 0
        %561 = vmatpush1.bf16.msra.mxu0 %v481
        %562 = vmatprep.subr.bf16.mxu0 0
        %563 = vmatpush1.bf16.msra.mxu0 %v482
        %564 = vmatprep.subr.bf16.mxu0 0
        %565 = vmatpush1.bf16.msra.mxu0 %v483
        %566 = vmatprep.subr.bf16.mxu0 0
        %567 = vmatpush1.bf16.msra.mxu0 %v484
        %568 = vmatprep.subr.bf16.mxu0 0
        %569 = vmatpush1.bf16.msra.mxu0 %v485
        %570 = vmatprep.subr.bf16.mxu0 0
        %571 = vmatpush1.bf16.msra.mxu0 0
        %572 = vmatprep.subr.bf16.mxu0 0
        %573 = vmatpush1.bf16.msra.mxu0 0
        %574 = vmatprep.subr.bf16.mxu0 0
        %575 = vmatpush1.bf16.msra.mxu0 0
        %576 = vmatprep.subr.bf16.mxu0 0
        %577 = vmatpush1.bf16.msra.mxu0 0
        %578 = vmatprep.subr.bf16.mxu0 0
        %579 = vmatpush1.bf16.msra.mxu0 0
        %580 = vmatprep.subr.bf16.mxu0 0
        %581 = vmatpush1.bf16.msra.mxu0 0
        %582 = vmatprep.subr.bf16.mxu0 0
        %583 = vmatpush1.bf16.msra.mxu0 0
        %584 = vmatprep.subr.bf16.mxu0 0
        %585 = vmatpush1.bf16.msra.mxu0 0
        %586 = vmatprep.mubr.bf16.mxu0 0
        %587 = vmatmul.mubr.bf16.gmra.mrb[0].mxu0 %v538
        %v588 = vpop.f32.mrb[0].mxu0
        %v589 = vadd.f32 0.0, %v588
        %v590 = vpop.f32.mrb[0].mxu0
        %v591 = vpop.f32.mrb[0].mxu0
        %v592 = vadd.f32 0.0, %v591
        %v593 = vpop.f32.mrb[0].mxu0
        %594 = vmatprep.mubr.bf16.mxu0 0
        %595 = vmatmul.mubr.bf16.gmra.mrb[0].mxu0 %v539
        %v596 = vpop.f32.mrb[0].mxu0
        %v597 = vadd.f32 0.0, %v596
        %v598 = vpop.f32.mrb[0].mxu0
        %v599 = vpop.f32.mrb[0].mxu0
        %v600 = vadd.f32 0.0, %v599
        %v601 = vpop.f32.mrb[0].mxu0
        %602 = vmatprep.mubr.bf16.mxu0 0
        %603 = vmatmul.mubr.bf16.gmra.mrb[0].mxu0 %v540
        %v604 = vpop.f32.mrb[0].mxu0
        %v605 = vadd.f32 0.0, %v604
        %v606 = vpop.f32.mrb[0].mxu0
        %v607 = vpop.f32.mrb[0].mxu0
        %v608 = vadd.f32 0.0, %v607
        %v609 = vpop.f32.mrb[0].mxu0
        %610 = vmatprep.mubr.bf16.mxu0 0
        %611 = vmatmul.mubr.bf16.gmra.mrb[0].mxu0 %v541
        %v612 = vpop.f32.mrb[0].mxu0
        %v613 = vadd.f32 0.0, %v612
        %v614 = vpop.f32.mrb[0].mxu0
        %v615 = vpop.f32.mrb[0].mxu0
        %v616 = vadd.f32 0.0, %v615
        %v617 = vpop.f32.mrb[0].mxu0
        %618 = vmatprep.mubr.bf16.mxu0 0
        %619 = vmatmul.mubr.bf16.gmra.mrb[0].mxu0 %v542
        %v620 = vpop.f32.mrb[0].mxu0
        %v621 = vadd.f32 0.0, %v620
        %v622 = vpop.f32.mrb[0].mxu0
        %v623 = vpop.f32.mrb[0].mxu0
        %v624 = vadd.f32 0.0, %v623
        %v625 = vpop.f32.mrb[0].mxu0
        %626 = vmatprep.mubr.bf16.mxu0 0
        %627 = vmatmul.mubr.bf16.gmra.mrb[0].mxu0 %v543
        %v628 = vpop.f32.mrb[0].mxu0
        %v629 = vadd.f32 0.0, %v628
        %v630 = vpop.f32.mrb[0].mxu0
        %v631 = vpop.f32.mrb[0].mxu0
        %v632 = vadd.f32 0.0, %v631
        %v633 = vpop.f32.mrb[0].mxu0
        %634 = vmatprep.mubr.bf16.mxu0 0
        %635 = vmatmul.mubr.bf16.gmra.mrb[0].mxu0 %v544
        %v636 = vpop.f32.mrb[0].mxu0
        %v637 = vadd.f32 0.0, %v636
        %v638 = vpop.f32.mrb[0].mxu0
        %v639 = vpop.f32.mrb[0].mxu0
        %v640 = vadd.f32 0.0, %v639
        %v641 = vpop.f32.mrb[0].mxu0
        %642 = vmatprep.mubr.bf16.mxu0 0
        %643 = vmatmul.mubr.bf16.gmra.mrb[0].mxu0 %v545
        %v644 = vpop.f32.mrb[0].mxu0
        %v645 = vadd.f32 0.0, %v644
        %v646 = vpop.f32.mrb[0].mxu0
        %v647 = vpop.f32.mrb[0].mxu0
        %v648 = vadd.f32 0.0, %v647
        %v649 = vpop.f32.mrb[0].mxu0
        %650 = vdwg.mxu0
        %v651 = vmul.f32 %v589, 2.0
        %v652 = vmul.f32 %v592, 2.0
        %v653 = vmul.f32 %v597, 2.0
        %v654 = vmul.f32 %v600, 2.0
        %v655 = vmul.f32 %v605, 2.0
        %v656 = vmul.f32 %v608, 2.0
        %v657 = vmul.f32 %v613, 2.0
        %v658 = vmul.f32 %v616, 2.0
        %v659 = vmul.f32 %v621, 2.0
        %v660 = vmul.f32 %v624, 2.0
        %v661 = vmul.f32 %v629, 2.0
        %v662 = vmul.f32 %v632, 2.0
        %v663 = vmul.f32 %v637, 2.0
        %v664 = vmul.f32 %v640, 2.0
        %v665 = vmul.f32 %v645, 2.0
        %v666 = vmul.f32 %v648, 2.0
        %v667 = vsub.f32 %v651, %v490
        %v668 = vsub.f32 %v652, %v491
        %v669 = vsub.f32 %v653, %v492
        %v670 = vsub.f32 %v654, %v493
        %v671 = vsub.f32 %v655, %v494
        %v672 = vsub.f32 %v656, %v495
        %v673 = vsub.f32 %v657, %v496
        %v674 = vsub.f32 %v658, %v497
        %v675 = vsub.f32 %v659, %v498
        %v676 = vsub.f32 %v660, %v499
        %v677 = vsub.f32 %v661, %v500
        %v678 = vsub.f32 %v662, %v501
        %v679 = vsub.f32 %v663, %v502
        %v680 = vsub.f32 %v664, %v503
        %v681 = vsub.f32 %v665, %v504
        %v682 = vsub.f32 %v666, %v505
        %s683 = sadd.s32 %s19, 1
        %s684 = smul.u32 %s683, 128
        %s685 = sadd.s32 %s214, %s684
        %s686 = scalar_lea.vmem [#allocation2], %s685
        %687 = vst [vmem:[%s686] sm:$0xff] %v667
        %688 = vst [vmem:[%s686 + $0x8] sm:$0xff] %v668
        %689 = vst [vmem:[%s686 + $0x10] sm:$0xff] %v669
        %690 = vst [vmem:[%s686 + $0x18] sm:$0xff] %v670
        %691 = vst [vmem:[%s686 + $0x20] sm:$0xff] %v671
        %692 = vst [vmem:[%s686 + $0x28] sm:$0xff] %v672
        %693 = vst [vmem:[%s686 + $0x30] sm:$0xff] %v673
        %694 = vst [vmem:[%s686 + $0x38] sm:$0xff] %v674
        %695 = vst [vmem:[%s686 + $0x40] sm:$0xff] %v675
        %696 = vst [vmem:[%s686 + $0x48] sm:$0xff] %v676
        %697 = vst [vmem:[%s686 + $0x50] sm:$0xff] %v677
        %698 = vst [vmem:[%s686 + $0x58] sm:$0xff] %v678
        %699 = vst [vmem:[%s686 + $0x60] sm:$0xff] %v679
        %700 = vst [vmem:[%s686 + $0x68] sm:$0xff] %v680
        %701 = vst [vmem:[%s686 + $0x70] sm:$0xff] %v681
        %702 = vst [vmem:[%s686 + $0x78] sm:$0xff] %v682
      $region44: #{chebnet_forward.3} parent=35 // pred_fallthru
        _
      %p703 = scmp.eq.s32.totalorder %s19, 1
      // Predicated region
      $region45: #{chebnet_forward.3} parent=35 // pred_check
        %p704 = pneg %p703
      $region46: #{chebnet_forward.3} parent=35 // pred_check_branch
        %706 = sbr.rel (%p704) target = $region48
      $region47: #{chebnet_forward.3} parent=35 // pred_region
        %s707 = scalar_lea.vmem [#allocation2], %s214
        %v708 = vld [vmem:[%s707] sm:$0xff]
        %v709 = vld [vmem:[%s707 + $0x8] sm:$0xff]
        %v710 = vld [vmem:[%s707 + $0x10] sm:$0xff]
        %v711 = vld [vmem:[%s707 + $0x18] sm:$0xff]
        %v712 = vld [vmem:[%s707 + $0x20] sm:$0xff]
        %v713 = vld [vmem:[%s707 + $0x28] sm:$0xff]
        %v714 = vld [vmem:[%s707 + $0x30] sm:$0xff]
        %v715 = vld [vmem:[%s707 + $0x38] sm:$0xff]
        %v716 = vld [vmem:[%s707 + $0x40] sm:$0xff]
        %v717 = vld [vmem:[%s707 + $0x48] sm:$0xff]
        %v718 = vld [vmem:[%s707 + $0x50] sm:$0xff]
        %v719 = vld [vmem:[%s707 + $0x58] sm:$0xff]
        %v720 = vld [vmem:[%s707 + $0x60] sm:$0xff]
        %v721 = vld [vmem:[%s707 + $0x68] sm:$0xff]
        %v722 = vld [vmem:[%s707 + $0x70] sm:$0xff]
        %v723 = vld [vmem:[%s707 + $0x78] sm:$0xff]
        %s724 = sadd.s32 %s214, 128
        %s725 = scalar_lea.vmem [#allocation2], %s724
        %v726 = vld [vmem:[%s725] sm:$0xff]
        %v727 = vld [vmem:[%s725 + $0x8] sm:$0xff]
        %v728 = vld [vmem:[%s725 + $0x10] sm:$0xff]
        %v729 = vld [vmem:[%s725 + $0x18] sm:$0xff]
        %v730 = vld [vmem:[%s725 + $0x20] sm:$0xff]
        %v731 = vld [vmem:[%s725 + $0x28] sm:$0xff]
        %v732 = vld [vmem:[%s725 + $0x30] sm:$0xff]
        %v733 = vld [vmem:[%s725 + $0x38] sm:$0xff]
        %v734 = vld [vmem:[%s725 + $0x40] sm:$0xff]
        %v735 = vld [vmem:[%s725 + $0x48] sm:$0xff]
        %v736 = vld [vmem:[%s725 + $0x50] sm:$0xff]
        %v737 = vld [vmem:[%s725 + $0x58] sm:$0xff]
        %v738 = vld [vmem:[%s725 + $0x60] sm:$0xff]
        %v739 = vld [vmem:[%s725 + $0x68] sm:$0xff]
        %v740 = vld [vmem:[%s725 + $0x70] sm:$0xff]
        %v741 = vld [vmem:[%s725 + $0x78] sm:$0xff]
        %s742 = sadd.s32 %s214, 256
        %s743 = scalar_lea.vmem [#allocation2], %s742
        %v744 = vld [vmem:[%s743] sm:$0xff]
        %v745 = vld [vmem:[%s743 + $0x8] sm:$0xff]
        %v746 = vld [vmem:[%s743 + $0x10] sm:$0xff]
        %v747 = vld [vmem:[%s743 + $0x18] sm:$0xff]
        %v748 = vld [vmem:[%s743 + $0x20] sm:$0xff]
        %v749 = vld [vmem:[%s743 + $0x28] sm:$0xff]
        %v750 = vld [vmem:[%s743 + $0x30] sm:$0xff]
        %v751 = vld [vmem:[%s743 + $0x38] sm:$0xff]
        %v752 = vld [vmem:[%s743 + $0x40] sm:$0xff]
        %v753 = vld [vmem:[%s743 + $0x48] sm:$0xff]
        %v754 = vld [vmem:[%s743 + $0x50] sm:$0xff]
        %v755 = vld [vmem:[%s743 + $0x58] sm:$0xff]
        %v756 = vld [vmem:[%s743 + $0x60] sm:$0xff]
        %v757 = vld [vmem:[%s743 + $0x68] sm:$0xff]
        %v758 = vld [vmem:[%s743 + $0x70] sm:$0xff]
        %v759 = vld [vmem:[%s743 + $0x78] sm:$0xff]
        %v760 = vld [vmem:[%s2] sm:$0xff]
        %v761 = vld [vmem:[%s2 + $0x8] sm:$0xff]
        %v762 = vld [vmem:[%s2 + $0x10] sm:$0xff]
        %v763 = vld [vmem:[%s2 + $0x18] sm:$0xff]
        %v764 = vld [vmem:[%s2 + $0x20] sm:$0xff]
        %v765 = vld [vmem:[%s2 + $0x28] sm:$0xff]
        %v766 = vld [vmem:[%s2 + $0x30] sm:$0xff]
        %v767 = vld [vmem:[%s2 + $0x38] sm:$0xff]
        %v768 = vld [vmem:[%s2 + $0x40] sm:$0xff]
        %v769 = vld [vmem:[%s2 + $0x48] sm:$0xff]
        %v770 = vld [vmem:[%s2 + $0x50] sm:$0xff]
        %v771 = vld [vmem:[%s2 + $0x58] sm:$0xff]
        %v772 = vld [vmem:[%s2 + $0x60] sm:$0xff]
        %v773 = vld [vmem:[%s2 + $0x68] sm:$0xff]
        %v774 = vld [vmem:[%s2 + $0x70] sm:$0xff]
        %v775 = vld [vmem:[%s2 + $0x78] sm:$0xff]
        %v776 = vld [vmem:[%s2 + $0x80] sm:$0xff]
        %v777 = vld [vmem:[%s2 + $0x88] sm:$0xff]
        %v778 = vld [vmem:[%s2 + $0x90] sm:$0xff]
        %v779 = vld [vmem:[%s2 + $0x98] sm:$0xff]
        %v780 = vld [vmem:[%s2 + $0xa0] sm:$0xff]
        %v781 = vld [vmem:[%s2 + $0xa8] sm:$0xff]
        %v782 = vld [vmem:[%s2 + $0xb0] sm:$0xff]
        %v783 = vld [vmem:[%s2 + $0xb8] sm:$0xff]
        %v784 = vld [vmem:[%s2 + $0xc0] sm:$0xff]
        %v785 = vld [vmem:[%s2 + $0xc8] sm:$0xff]
        %v786 = vld [vmem:[%s2 + $0xd0] sm:$0xff]
        %v787 = vld [vmem:[%s2 + $0xd8] sm:$0xff]
        %v788 = vld [vmem:[%s2 + $0xe0] sm:$0xff]
        %v789 = vld [vmem:[%s2 + $0xe8] sm:$0xff]
        %v790 = vld [vmem:[%s2 + $0xf0] sm:$0xff]
        %v791 = vld [vmem:[%s2 + $0xf8] sm:$0xff]
        %v792 = vld [vmem:[%s2 + $0x100] sm:$0xff]
        %v793 = vld [vmem:[%s2 + $0x108] sm:$0xff]
        %v794 = vld [vmem:[%s2 + $0x110] sm:$0xff]
        %v795 = vld [vmem:[%s2 + $0x118] sm:$0xff]
        %v796 = vld [vmem:[%s2 + $0x120] sm:$0xff]
        %v797 = vld [vmem:[%s2 + $0x128] sm:$0xff]
        %v798 = vld [vmem:[%s2 + $0x130] sm:$0xff]
        %v799 = vld [vmem:[%s2 + $0x138] sm:$0xff]
        %v800 = vld [vmem:[%s2 + $0x140] sm:$0xff]
        %v801 = vld [vmem:[%s2 + $0x148] sm:$0xff]
        %v802 = vld [vmem:[%s2 + $0x150] sm:$0xff]
        %v803 = vld [vmem:[%s2 + $0x158] sm:$0xff]
        %v804 = vld [vmem:[%s2 + $0x160] sm:$0xff]
        %v805 = vld [vmem:[%s2 + $0x168] sm:$0xff]
        %v806 = vld [vmem:[%s2 + $0x170] sm:$0xff]
        %v807 = vld [vmem:[%s2 + $0x178] sm:$0xff]
        %v808 = vld [vmem:[%s3] sm:$0x1]
        %v810 = vlaneseq
        %v811 = vshrl.u32 %v810, 7
        %v812 = vsub.s32 0, %v811
        %v813 = vrot.slane %v808, %v812
        %815 = vmatprep.subr.mxu0 0.0
        %816 = vmatpush1.msra.mxu0 %v760
        %817 = vmatprep.subr.mxu0 0.0
        %818 = vmatpush1.msra.mxu0 %v761
        %819 = vmatprep.subr.mxu0 0.0
        %820 = vmatpush1.msra.mxu0 %v762
        %821 = vmatprep.subr.mxu0 0.0
        %822 = vmatpush1.msra.mxu0 %v763
        %823 = vmatprep.subr.mxu0 0.0
        %824 = vmatpush1.msra.mxu0 %v764
        %825 = vmatprep.subr.mxu0 0.0
        %826 = vmatpush1.msra.mxu0 %v765
        %827 = vmatprep.subr.mxu0 0.0
        %828 = vmatpush1.msra.mxu0 %v766
        %829 = vmatprep.subr.mxu0 0.0
        %830 = vmatpush1.msra.mxu0 %v767
        %831 = vmatprep.subr.mxu0 0.0
        %832 = vmatpush1.msra.mxu0 %v768
        %833 = vmatprep.subr.mxu0 0.0
        %834 = vmatpush1.msra.mxu0 %v769
        %835 = vmatprep.subr.mxu0 0.0
        %836 = vmatpush1.msra.mxu0 %v770
        %837 = vmatprep.subr.mxu0 0.0
        %838 = vmatpush1.msra.mxu0 %v771
        %839 = vmatprep.subr.mxu0 0.0
        %840 = vmatpush1.msra.mxu0 %v772
        %841 = vmatprep.subr.mxu0 0.0
        %842 = vmatpush1.msra.mxu0 %v773
        %843 = vmatprep.subr.mxu0 0.0
        %844 = vmatpush1.msra.mxu0 %v774
        %845 = vmatprep.subr.mxu0 0.0
        %846 = vmatpush1.msra.mxu0 %v775
        %847 = vmatprep.subr.mxu0 0.0
        %848 = vmatpush1.msra.mxu0 %v776
        %849 = vmatprep.subr.mxu0 0.0
        %850 = vmatpush1.msra.mxu0 %v777
        %851 = vmatprep.subr.mxu0 0.0
        %852 = vmatpush1.msra.mxu0 %v778
        %853 = vmatprep.subr.mxu0 0.0
        %854 = vmatpush1.msra.mxu0 %v779
        %855 = vmatprep.subr.mxu0 0.0
        %856 = vmatpush1.msra.mxu0 %v780
        %857 = vmatprep.subr.mxu0 0.0
        %858 = vmatpush1.msra.mxu0 %v781
        %859 = vmatprep.subr.mxu0 0.0
        %860 = vmatpush1.msra.mxu0 %v782
        %861 = vmatprep.subr.mxu0 0.0
        %862 = vmatpush1.msra.mxu0 %v783
        %863 = vmatprep.subr.mxu0 0.0
        %864 = vmatpush1.msra.mxu0 %v784
        %865 = vmatprep.subr.mxu0 0.0
        %866 = vmatpush1.msra.mxu0 %v785
        %867 = vmatprep.subr.mxu0 0.0
        %868 = vmatpush1.msra.mxu0 %v786
        %869 = vmatprep.subr.mxu0 0.0
        %870 = vmatpush1.msra.mxu0 %v787
        %871 = vmatprep.subr.mxu0 0.0
        %872 = vmatpush1.msra.mxu0 %v788
        %873 = vmatprep.subr.mxu0 0.0
        %874 = vmatpush1.msra.mxu0 %v789
        %875 = vmatprep.subr.mxu0 0.0
        %876 = vmatpush1.msra.mxu0 %v790
        %877 = vmatprep.subr.mxu0 0.0
        %878 = vmatpush1.msra.mxu0 %v791
        %879 = vmatprep.mubr.f32.mxu0 %v726
        %880 = vmatmul.mubr.f32.gmra.mrb[0].mxu0 %v708
        %v881 = vpop.f32.mrb[0].mxu0
        %v882 = vadd.f32 %v813, %v881
        %v883 = vpop.f32.mrb[0].mxu0
        %884 = vmatprep.mubr.f32.mxu0 %v727
        %885 = vmatmul.mubr.f32.gmra.mrb[0].mxu0 %v709
        %v886 = vpop.f32.mrb[0].mxu0
        %v887 = vadd.f32 %v813, %v886
        %v888 = vpop.f32.mrb[0].mxu0
        %889 = vmatprep.mubr.f32.mxu0 %v728
        %890 = vmatmul.mubr.f32.gmra.mrb[0].mxu0 %v710
        %v891 = vpop.f32.mrb[0].mxu0
        %v892 = vadd.f32 %v813, %v891
        %v893 = vpop.f32.mrb[0].mxu0
        %894 = vmatprep.mubr.f32.mxu0 %v729
        %895 = vmatmul.mubr.f32.gmra.mrb[0].mxu0 %v711
        %v896 = vpop.f32.mrb[0].mxu0
        %v897 = vadd.f32 %v813, %v896
        %v898 = vpop.f32.mrb[0].mxu0
        %899 = vmatprep.mubr.f32.mxu0 %v730
        %900 = vmatmul.mubr.f32.gmra.mrb[0].mxu0 %v712
        %v901 = vpop.f32.mrb[0].mxu0
        %v902 = vadd.f32 %v813, %v901
        %v903 = vpop.f32.mrb[0].mxu0
        %904 = vmatprep.mubr.f32.mxu0 %v731
        %905 = vmatmul.mubr.f32.gmra.mrb[0].mxu0 %v713
        %v906 = vpop.f32.mrb[0].mxu0
        %v907 = vadd.f32 %v813, %v906
        %v908 = vpop.f32.mrb[0].mxu0
        %909 = vmatprep.mubr.f32.mxu0 %v732
        %910 = vmatmul.mubr.f32.gmra.mrb[0].mxu0 %v714
        %v911 = vpop.f32.mrb[0].mxu0
        %v912 = vadd.f32 %v813, %v911
        %v913 = vpop.f32.mrb[0].mxu0
        %914 = vmatprep.mubr.f32.mxu0 %v733
        %915 = vmatmul.mubr.f32.gmra.mrb[0].mxu0 %v715
        %v916 = vpop.f32.mrb[0].mxu0
        %v917 = vadd.f32 %v813, %v916
        %v918 = vpop.f32.mrb[0].mxu0
        %919 = vmatprep.mubr.f32.mxu0 %v734
        %920 = vmatmul.mubr.f32.gmra.mrb[0].mxu0 %v716
        %v921 = vpop.f32.mrb[0].mxu0
        %v922 = vadd.f32 %v813, %v921
        %v923 = vpop.f32.mrb[0].mxu0
        %924 = vmatprep.mubr.f32.mxu0 %v735
        %925 = vmatmul.mubr.f32.gmra.mrb[0].mxu0 %v717
        %v926 = vpop.f32.mrb[0].mxu0
        %v927 = vadd.f32 %v813, %v926
        %v928 = vpop.f32.mrb[0].mxu0
        %929 = vmatprep.mubr.f32.mxu0 %v736
        %930 = vmatmul.mubr.f32.gmra.mrb[0].mxu0 %v718
        %v931 = vpop.f32.mrb[0].mxu0
        %v932 = vadd.f32 %v813, %v931
        %v933 = vpop.f32.mrb[0].mxu0
        %934 = vmatprep.mubr.f32.mxu0 %v737
        %935 = vmatmul.mubr.f32.gmra.mrb[0].mxu0 %v719
        %v936 = vpop.f32.mrb[0].mxu0
        %v937 = vadd.f32 %v813, %v936
        %v938 = vpop.f32.mrb[0].mxu0
        %939 = vmatprep.mubr.f32.mxu0 %v738
        %940 = vmatmul.mubr.f32.gmra.mrb[0].mxu0 %v720
        %v941 = vpop.f32.mrb[0].mxu0
        %v942 = vadd.f32 %v813, %v941
        %v943 = vpop.f32.mrb[0].mxu0
        %944 = vmatprep.mubr.f32.mxu0 %v739
        %945 = vmatmul.mubr.f32.gmra.mrb[0].mxu0 %v721
        %v946 = vpop.f32.mrb[0].mxu0
        %v947 = vadd.f32 %v813, %v946
        %v948 = vpop.f32.mrb[0].mxu0
        %949 = vmatprep.mubr.f32.mxu0 %v740
        %950 = vmatmul.mubr.f32.gmra.mrb[0].mxu0 %v722
        %v951 = vpop.f32.mrb[0].mxu0
        %v952 = vadd.f32 %v813, %v951
        %v953 = vpop.f32.mrb[0].mxu0
        %954 = vmatprep.mubr.f32.mxu0 %v741
        %955 = vmatmul.mubr.f32.gmra.mrb[0].mxu0 %v723
        %v956 = vpop.f32.mrb[0].mxu0
        %v957 = vadd.f32 %v813, %v956
        %v958 = vpop.f32.mrb[0].mxu0
        %959 = vdwg.mxu0
        %960 = vmatprep.subr.mxu0 0.0
        %961 = vmatpush1.msra.mxu0 %v792
        %962 = vmatprep.subr.mxu0 0.0
        %963 = vmatpush1.msra.mxu0 %v793
        %964 = vmatprep.subr.mxu0 0.0
        %965 = vmatpush1.msra.mxu0 %v794
        %966 = vmatprep.subr.mxu0 0.0
        %967 = vmatpush1.msra.mxu0 %v795
        %968 = vmatprep.subr.mxu0 0.0
        %969 = vmatpush1.msra.mxu0 %v796
        %970 = vmatprep.subr.mxu0 0.0
        %971 = vmatpush1.msra.mxu0 %v797
        %972 = vmatprep.subr.mxu0 0.0
        %973 = vmatpush1.msra.mxu0 %v798
        %974 = vmatprep.subr.mxu0 0.0
        %975 = vmatpush1.msra.mxu0 %v799
        %976 = vmatprep.subr.mxu0 0.0
        %977 = vmatpush1.msra.mxu0 %v800
        %978 = vmatprep.subr.mxu0 0.0
        %979 = vmatpush1.msra.mxu0 %v801
        %980 = vmatprep.subr.mxu0 0.0
        %981 = vmatpush1.msra.mxu0 %v802
        %982 = vmatprep.subr.mxu0 0.0
        %983 = vmatpush1.msra.mxu0 %v803
        %984 = vmatprep.subr.mxu0 0.0
        %985 = vmatpush1.msra.mxu0 %v804
        %986 = vmatprep.subr.mxu0 0.0
        %987 = vmatpush1.msra.mxu0 %v805
        %988 = vmatprep.subr.mxu0 0.0
        %989 = vmatpush1.msra.mxu0 %v806
        %990 = vmatprep.subr.mxu0 0.0
        %991 = vmatpush1.msra.mxu0 %v807
        %992 = vmatprep.subr.mxu0 0.0
        %993 = vmatpush1.msra.mxu0 0.0
        %994 = vmatprep.subr.mxu0 0.0
        %995 = vmatpush1.msra.mxu0 0.0
        %996 = vmatprep.subr.mxu0 0.0
        %997 = vmatpush1.msra.mxu0 0.0
        %998 = vmatprep.subr.mxu0 0.0
        %999 = vmatpush1.msra.mxu0 0.0
        %1000 = vmatprep.subr.mxu0 0.0
        %1001 = vmatpush1.msra.mxu0 0.0
        %1002 = vmatprep.subr.mxu0 0.0
        %1003 = vmatpush1.msra.mxu0 0.0
        %1004 = vmatprep.subr.mxu0 0.0
        %1005 = vmatpush1.msra.mxu0 0.0
        %1006 = vmatprep.subr.mxu0 0.0
        %1007 = vmatpush1.msra.mxu0 0.0
        %1008 = vmatprep.subr.mxu0 0.0
        %1009 = vmatpush1.msra.mxu0 0.0
        %1010 = vmatprep.subr.mxu0 0.0
        %1011 = vmatpush1.msra.mxu0 0.0
        %1012 = vmatprep.subr.mxu0 0.0
        %1013 = vmatpush1.msra.mxu0 0.0
        %1014 = vmatprep.subr.mxu0 0.0
        %1015 = vmatpush1.msra.mxu0 0.0
        %1016 = vmatprep.subr.mxu0 0.0
        %1017 = vmatpush1.msra.mxu0 0.0
        %1018 = vmatprep.subr.mxu0 0.0
        %1019 = vmatpush1.msra.mxu0 0.0
        %1020 = vmatprep.subr.mxu0 0.0
        %1021 = vmatpush1.msra.mxu0 0.0
        %1022 = vmatprep.subr.mxu0 0.0
        %1023 = vmatpush1.msra.mxu0 0.0
        %1024 = vmatprep.mubr.f32.mxu0 0.0
        %1025 = vmatmul.mubr.f32.gmra.mrb[0].mxu0 %v744
        %v1026 = vpop.f32.mrb[0].mxu0
        %v1027 = vadd.f32 %v882, %v1026
        %v1028 = vpop.f32.mrb[0].mxu0
        %1029 = vmatprep.mubr.f32.mxu0 0.0
        %1030 = vmatmul.mubr.f32.gmra.mrb[0].mxu0 %v745
        %v1031 = vpop.f32.mrb[0].mxu0
        %v1032 = vadd.f32 %v887, %v1031
        %v1033 = vpop.f32.mrb[0].mxu0
        %1034 = vmatprep.mubr.f32.mxu0 0.0
        %1035 = vmatmul.mubr.f32.gmra.mrb[0].mxu0 %v746
        %v1036 = vpop.f32.mrb[0].mxu0
        %v1037 = vadd.f32 %v892, %v1036
        %v1038 = vpop.f32.mrb[0].mxu0
        %1039 = vmatprep.mubr.f32.mxu0 0.0
        %1040 = vmatmul.mubr.f32.gmra.mrb[0].mxu0 %v747
        %v1041 = vpop.f32.mrb[0].mxu0
        %v1042 = vadd.f32 %v897, %v1041
        %v1043 = vpop.f32.mrb[0].mxu0
        %1044 = vmatprep.mubr.f32.mxu0 0.0
        %1045 = vmatmul.mubr.f32.gmra.mrb[0].mxu0 %v748
        %v1046 = vpop.f32.mrb[0].mxu0
        %v1047 = vadd.f32 %v902, %v1046
        %v1048 = vpop.f32.mrb[0].mxu0
        %1049 = vmatprep.mubr.f32.mxu0 0.0
        %1050 = vmatmul.mubr.f32.gmra.mrb[0].mxu0 %v749
        %v1051 = vpop.f32.mrb[0].mxu0
        %v1052 = vadd.f32 %v907, %v1051
        %v1053 = vpop.f32.mrb[0].mxu0
        %1054 = vmatprep.mubr.f32.mxu0 0.0
        %1055 = vmatmul.mubr.f32.gmra.mrb[0].mxu0 %v750
        %v1056 = vpop.f32.mrb[0].mxu0
        %v1057 = vadd.f32 %v912, %v1056
        %v1058 = vpop.f32.mrb[0].mxu0
        %1059 = vmatprep.mubr.f32.mxu0 0.0
        %1060 = vmatmul.mubr.f32.gmra.mrb[0].mxu0 %v751
        %v1061 = vpop.f32.mrb[0].mxu0
        %v1062 = vadd.f32 %v917, %v1061
        %v1063 = vpop.f32.mrb[0].mxu0
        %1064 = vmatprep.mubr.f32.mxu0 0.0
        %1065 = vmatmul.mubr.f32.gmra.mrb[0].mxu0 %v752
        %v1066 = vpop.f32.mrb[0].mxu0
        %v1067 = vadd.f32 %v922, %v1066
        %v1068 = vpop.f32.mrb[0].mxu0
        %1069 = vmatprep.mubr.f32.mxu0 0.0
        %1070 = vmatmul.mubr.f32.gmra.mrb[0].mxu0 %v753
        %v1071 = vpop.f32.mrb[0].mxu0
        %v1072 = vadd.f32 %v927, %v1071
        %v1073 = vpop.f32.mrb[0].mxu0
        %1074 = vmatprep.mubr.f32.mxu0 0.0
        %1075 = vmatmul.mubr.f32.gmra.mrb[0].mxu0 %v754
        %v1076 = vpop.f32.mrb[0].mxu0
        %v1077 = vadd.f32 %v932, %v1076
        %v1078 = vpop.f32.mrb[0].mxu0
        %1079 = vmatprep.mubr.f32.mxu0 0.0
        %1080 = vmatmul.mubr.f32.gmra.mrb[0].mxu0 %v755
        %v1081 = vpop.f32.mrb[0].mxu0
        %v1082 = vadd.f32 %v937, %v1081
        %v1083 = vpop.f32.mrb[0].mxu0
        %1084 = vmatprep.mubr.f32.mxu0 0.0
        %1085 = vmatmul.mubr.f32.gmra.mrb[0].mxu0 %v756
        %v1086 = vpop.f32.mrb[0].mxu0
        %v1087 = vadd.f32 %v942, %v1086
        %v1088 = vpop.f32.mrb[0].mxu0
        %1089 = vmatprep.mubr.f32.mxu0 0.0
        %1090 = vmatmul.mubr.f32.gmra.mrb[0].mxu0 %v757
        %v1091 = vpop.f32.mrb[0].mxu0
        %v1092 = vadd.f32 %v947, %v1091
        %v1093 = vpop.f32.mrb[0].mxu0
        %1094 = vmatprep.mubr.f32.mxu0 0.0
        %1095 = vmatmul.mubr.f32.gmra.mrb[0].mxu0 %v758
        %v1096 = vpop.f32.mrb[0].mxu0
        %v1097 = vadd.f32 %v952, %v1096
        %v1098 = vpop.f32.mrb[0].mxu0
        %1099 = vmatprep.mubr.f32.mxu0 0.0
        %1100 = vmatmul.mubr.f32.gmra.mrb[0].mxu0 %v759
        %v1101 = vpop.f32.mrb[0].mxu0
        %v1102 = vadd.f32 %v957, %v1101
        %v1103 = vpop.f32.mrb[0].mxu0
        %1104 = vdwg.mxu0
        %1105 = vst [vmem:[%s211] sm:$0xff] %v1027
        %1106 = vst [vmem:[%s211 + $0x8] sm:$0xff] %v1032
        %1107 = vst [vmem:[%s211 + $0x10] sm:$0xff] %v1037
        %1108 = vst [vmem:[%s211 + $0x18] sm:$0xff] %v1042
        %1109 = vst [vmem:[%s211 + $0x20] sm:$0xff] %v1047
        %1110 = vst [vmem:[%s211 + $0x28] sm:$0xff] %v1052
        %1111 = vst [vmem:[%s211 + $0x30] sm:$0xff] %v1057
        %1112 = vst [vmem:[%s211 + $0x38] sm:$0xff] %v1062
        %1113 = vst [vmem:[%s211 + $0x40] sm:$0xff] %v1067
        %1114 = vst [vmem:[%s211 + $0x48] sm:$0xff] %v1072
        %1115 = vst [vmem:[%s211 + $0x50] sm:$0xff] %v1077
        %1116 = vst [vmem:[%s211 + $0x58] sm:$0xff] %v1082
        %1117 = vst [vmem:[%s211 + $0x60] sm:$0xff] %v1087
        %1118 = vst [vmem:[%s211 + $0x68] sm:$0xff] %v1092
        %1119 = vst [vmem:[%s211 + $0x70] sm:$0xff] %v1097
        %1120 = vst [vmem:[%s211 + $0x78] sm:$0xff] %v1102
      $region48: #{chebnet_forward.3} parent=35 // pred_fallthru
        _
      %s1121 = smul.u32 16, %s20
      %p1122 = scmp.lt.s32.totalorder %s1121, 15
      %s1123 = scalar_select %p1122, %s1121, 15
      %s1124 = smul.addr %s1123, 8
      %s1125 = scalar_lea.vmem %s4, %s1124
      // Predicated region
      $region49: #{chebnet_forward.3} parent=35 // pred_check
        %p1126 = pneg %p134
      $region50: #{chebnet_forward.3} parent=35 // pred_check_branch
        %1128 = sbr.rel (%p1126) target = $region52
      $region51: #{chebnet_forward.3} parent=35 // pred_region
        %s1129 = smul.u32 16, %s20
      $region52: #{chebnet_forward.3} parent=35 // pred_fallthru
        _
      // Predicated region
      $region53: #{chebnet_forward.3} parent=35 // pred_check
        %p1130 = pneg %p134
      $region54: #{chebnet_forward.3} parent=35 // pred_check_branch
        %1132 = sbr.rel (%p1130) target = $region56
      $region55: #{chebnet_forward.3} parent=35 // pred_region
        %s1133 = smul.u32 16, %s20
        %p1134 = scmp.lt.s32.totalorder %s1133, 15
        %s1135 = scalar_select %p1134, %s1133, 15
        %s1136 = smul.addr %s1135, 8
        %s1137 = scalar_lea.vmem %s4, %s1136
      $region56: #{chebnet_forward.3} parent=35 // pred_fallthru
        _
    $region36: #{chebnet_forward.3} parent=5 // pred_fallthru
      _
    %p1138 = scmp.le.s32.totalorder 2, %s10
    // Predicated region
    $region57: #{chebnet_forward.3} parent=5 // pred_check
      %p1139 = pneg %p1138
    $region58: #{chebnet_forward.3} parent=5 // pred_check_branch
      %1141 = sbr.rel (%p1139) target = $region60
    $region59: #{chebnet_forward.3} parent=5 // pred_region
      %s1142 = ssub.s32 %s10, 2
    $region60: #{chebnet_forward.3} parent=5 // pred_fallthru
      _
  $region6: #{chebnet_forward.3} parent=0 // loop_footer
    %s14 = sadd.s32 1, %s10
  $region7: #{chebnet_forward.3} parent=0 // loop_footer_branch
    %9 = sbr.rel target = $region3
  $region8: #{chebnet_forward.3} parent=0 // loop_exit
    _

</llo_original>
